<compile_context>
chip_gen: v6e
topology: v6e:2x2x1
jax: 0.10.0
libtpu: 0.0.40
codegen_flags: <defaults>
</compile_context>

<pallas_src>
import functools

import jax
import jax.numpy as jnp
from jax.experimental import pallas as pl
from jax.experimental.pallas import tpu as pltpu

_HID = 128          # all hidden widths padded to one vreg-lane width
_ENC = 16           # true encoder bottleneck width
_LANE = 128
_SUBLANE = 8
_VMEM_BUDGET = 40 * 1024 * 1024   # per-step working-set budget used to clamp bm


def _round_up(n, m):
    return ((n + m - 1) // m) * m


def _leaky_relu_02(v):
    # LeakyReLU(negative_slope=0.2): max(x, 0.2*x) is exact for slope < 1.
    return jnp.maximum(v, 0.2 * v)


def fcae_kernel(x_ref,
                w1, b1, w2, b2, w3, b3,      # encoder params (padded)
                w4, b4, w5, b5, w6, b6,      # decoder params (padded)
                recon_ref, enc_ref):
    cdt = w1.dtype                            # MXU operand dtype (bf16 or f32)
    x = x_ref[...]                            # f32 tile; cast to cdt per layer

    def layer(h, w, b):
        y = jnp.dot(h.astype(cdt), w[...],
                    preferred_element_type=jnp.float32)
        return _leaky_relu_02(y + b[...])     # bias add + LeakyReLU in f32

    # TODO(synk): optional further win once store-bound no longer dominates:
    # sub-chunk rows with lax.fori_loop(unroll=True) to overlap each layer's
    # VPU epilogue with the next chunk's MXU pushes.

    # ---- encoder ----
    h = layer(x, w1, b1)
    h = layer(h, w2, b2)
    enc = layer(h, w3, b3)                    # (bm, 128); lanes 16..127 == 0
    enc_ref[...] = enc[:, :enc_ref.shape[-1]].astype(enc_ref.dtype)

    # ---- decoder ----
    h = layer(enc, w4, b4)
    h = layer(h, w5, b5)
    recon = layer(h, w6, b6)
    recon_ref[...] = recon.astype(recon_ref.dtype)   # bf16 downcast in-kernel


def init_fcae_params(key, input_size, dtype=jnp.float32):
    """PyTorch-style init: U(-1/sqrt(fan_in), 1/sqrt(fan_in)).

    Weights are stored as (in_features, out_features)."""
    dims = [(input_size, 128), (128, 64), (64, 16),
            (16, 64), (64, 128), (128, input_size)]
    params = []
    for (fan_in, fan_out) in dims:
        key, kw, kb = jax.random.split(key, 3)
        bound = 1.0 / jnp.sqrt(float(fan_in))
        w = jax.random.uniform(kw, (fan_in, fan_out), dtype, -bound, bound)
        b = jax.random.uniform(kb, (1, fan_out), dtype, -bound, bound)
        params.append((w, b))
    return params


def prepare_fcae_params(flat_params, compute_dtype=jnp.bfloat16):
    """Zero-pad hidden dims (16, 64) up to 128, pad F to a lane multiple, and
    cast weights to the MXU operand dtype.  Call ONCE at init; the padded
    tensors are fed straight to fcae_forward (no per-call re-padding)."""
    (w1, b1), (w2, b2), (w3, b3), (w4, b4), (w5, b5), (w6, b6) = flat_params
    F = w1.shape[0]
    F_pad = _round_up(F, _LANE)

    def pad(w, b, in_p, out_p):
        wp = jnp.zeros((in_p, out_p), jnp.float32)
        wp = wp.at[:w.shape[0], :w.shape[1]].set(w.astype(jnp.float32))
        bp = jnp.zeros((1, out_p), jnp.float32)
        bp = bp.at[:, :b.shape[1]].set(b.astype(jnp.float32))
        return wp.astype(compute_dtype), bp   # bias stays f32

    return (pad(w1, b1, F_pad, _HID),        # F   -> 128
            pad(w2, b2, _HID, _HID),         # 128 -> 64  (padded to 128)
            pad(w3, b3, _HID, _HID),         # 64  -> 16  (padded to 128)
            pad(w4, b4, _HID, _HID),         # 16  -> 64  (padded to 128)
            pad(w5, b5, _HID, _HID),         # 64  -> 128
            pad(w6, b6, _HID, F_pad))        # 128 -> F


def _vmem_per_step(bm, f_pad, cdt_bytes, recon_bytes):
    """Rough per-grid-step VMEM working-set estimate (bytes)."""
    streams = 2 * (bm * f_pad * 4            # x tile (f32), double-buffered
                   + bm * f_pad * recon_bytes  # recon tile
                   + bm * _ENC * 4)          # enc tile
    weights = 2 * ((2 * f_pad * _HID + 4 * _HID * _HID) * cdt_bytes
                   + (4 * _HID + 2 * f_pad) * 4)
    interm = 4 * bm * _HID * 4 + bm * f_pad * 4
    return streams + weights + interm


def _choose_bm(batch, bm_max):
    bm = max(_SUBLANE, min(bm_max, _round_up(batch, _SUBLANE)))
    # Keep >= 2 grid blocks where possible so dimension_semantics=("parallel",)
    # can still shard blocks across v7x's two TensorCores.
    if pl.cdiv(batch, bm) < 2 and batch >= 2 * _SUBLANE:
        bm = _round_up(pl.cdiv(batch, 2), _SUBLANE)
    return bm


@functools.partial(jax.jit, static_argnames=("bm", "out_dtype"))
def fcae_forward(x, padded_params, bm=1024, out_dtype=jnp.bfloat16):
    """FC-AE forward pass.

    x:             (B, input_size) float32 (fed as-is; bf16 cast in-kernel).
    padded_params: output of prepare_fcae_params (hoisted out of this call).
    bm:            batch tile sweep parameter (1024-2048 recommended for big B).
    out_dtype:     reconstruction dtype (bf16 default; use f32 as fallback).
    """
    B, F = x.shape
    (w1, b1), (w2, b2), (w3, b3), (w4, b4), (w5, b5), (w6, b6) = padded_params
    F_pad = w1.shape[0]

    # Keep x / recon blocks lane-dense if input_size is not a lane multiple.
    x_in = x if F_pad == F else jnp.pad(x, ((0, 0), (0, F_pad - F)))

    recon_bytes = jnp.dtype(out_dtype).itemsize
    cdt_bytes = jnp.dtype(w1.dtype).itemsize

    bm_eff = _choose_bm(B, bm)
    while (bm_eff > _SUBLANE
           and _vmem_per_step(bm_eff, F_pad, cdt_bytes, recon_bytes) > _VMEM_BUDGET):
        bm_eff = max(_SUBLANE, _round_up(bm_eff // 2, _SUBLANE))
    n_blocks = pl.cdiv(B, bm_eff)

    needed = _vmem_per_step(bm_eff, F_pad, cdt_bytes, recon_bytes)
    vmem_limit = int(min(48 * 1024 * 1024,
                         max(32 * 1024 * 1024, needed * 5 // 4)))

    def const_spec(arr):
        # Whole-array block, constant index -> stays resident across the grid.
        return pl.BlockSpec(arr.shape, lambda i: (0, 0))

    in_specs = [pl.BlockSpec((bm_eff, F_pad), lambda i: (i, 0))]
    for p in (w1, b1, w2, b2, w3, b3, w4, b4, w5, b5, w6, b6):
        in_specs.append(const_spec(p))

    out_specs = [
        pl.BlockSpec((bm_eff, F_pad), lambda i: (i, 0)),   # reconstruction
        pl.BlockSpec((bm_eff, _ENC), lambda i: (i, 0)),    # 16-wide encoding
    ]

    # Advisory cost hint for the XLA scheduler.
    flops = 2 * B * (2 * F_pad * _HID + 4 * _HID * _HID)
    weight_bytes = sum(int(w.size) * w.dtype.itemsize
                       + int(b.size) * b.dtype.itemsize
                       for (w, b) in padded_params)
    bytes_accessed = (B * F_pad * 4              # x read (f32)
                      + B * F_pad * recon_bytes  # recon write
                      + B * _ENC * 4             # enc write
                      + weight_bytes)

    recon, enc = pl.pallas_call(
        fcae_kernel,
        out_shape=(
            jax.ShapeDtypeStruct((B, F_pad), out_dtype),
            jax.ShapeDtypeStruct((B, _ENC), jnp.float32),
        ),
        grid_spec=pltpu.PrefetchScalarGridSpec(
            num_scalar_prefetch=0,
            grid=(n_blocks,),
            in_specs=in_specs,
            out_specs=out_specs,
        ),
        compiler_params=pltpu.CompilerParams(
            dimension_semantics=("parallel",),
            vmem_limit_bytes=vmem_limit),
        cost_estimate=pl.CostEstimate(
            flops=int(flops),
            transcendentals=0,
            bytes_accessed=int(bytes_accessed)),
    )(x_in, w1, b1, w2, b2, w3, b3, w4, b4, w5, b5, w6, b6)

    if F_pad != F:
        recon = recon[:, :F]
    return recon, enc


def fcae_reference(x, flat_params):
    """Plain-JAX f32 reference for validation."""
    h = x
    enc = None
    for idx, (w, b) in enumerate(flat_params):
        pre = h @ w + b
        h = jnp.maximum(pre, 0.2 * pre)
        if idx == 2:
            enc = h
    return h, enc


if __name__ == "__main__":
    key = jax.random.PRNGKey(0)
    key, kx, kp = jax.random.split(key, 3)

    batch = 200        # deliberately ragged (not a multiple of bm or 8)
    input_size = 256   # "length of amplitude array x" (lane multiple)

    x = jax.random.normal(kx, (batch, input_size), jnp.float32)
    params = tuple(init_fcae_params(kp, input_size))

    # One-time weight prep (zero-pad hidden dims + bf16 cast), outside forward.
    padded_params = prepare_fcae_params(params, compute_dtype=jnp.bfloat16)

    recon, enc = fcae_forward(x, padded_params, bm=1024, out_dtype=jnp.bfloat16)
    jax.block_until_ready((recon, enc))

    # Sanity check against plain-JAX f32 reference.  Kernel uses bf16 MXU
    # operands with f32 accumulation and a bf16 reconstruction output, so
    # tolerances are widened accordingly.
    recon_ref, enc_ref = fcae_reference(x, params)
    assert recon.shape == (batch, input_size)
    assert enc.shape == (batch, _ENC)
    assert jnp.allclose(recon.astype(jnp.float32), recon_ref, atol=7e-2, rtol=7e-2)
    assert jnp.allclose(enc, enc_ref, atol=5e-2, rtol=5e-2)

    print("KERNEL_OK")
</pallas_src>

<mosaic_0001>
module attributes {stable_mosaic.version = 11 : i64} {
  func.func @fcae_kernel(%arg0: i32, %arg1: memref<104x256xf32, #tpu.memory_space<vmem>>, %arg2: memref<256x128xbf16, #tpu.memory_space<vmem>>, %arg3: memref<1x128xf32, #tpu.memory_space<vmem>>, %arg4: memref<128x128xbf16, #tpu.memory_space<vmem>>, %arg5: memref<1x128xf32, #tpu.memory_space<vmem>>, %arg6: memref<128x128xbf16, #tpu.memory_space<vmem>>, %arg7: memref<1x128xf32, #tpu.memory_space<vmem>>, %arg8: memref<128x128xbf16, #tpu.memory_space<vmem>>, %arg9: memref<1x128xf32, #tpu.memory_space<vmem>>, %arg10: memref<128x128xbf16, #tpu.memory_space<vmem>>, %arg11: memref<1x128xf32, #tpu.memory_space<vmem>>, %arg12: memref<128x256xbf16, #tpu.memory_space<vmem>>, %arg13: memref<1x256xf32, #tpu.memory_space<vmem>>, %arg14: memref<104x256xbf16, #tpu.memory_space<vmem>>, %arg15: memref<104x16xf32, #tpu.memory_space<vmem>>) attributes {dimension_semantics = [#tpu.dimension_semantics<parallel>], iteration_bounds = array<i64: 2>, scalar_prefetch = 0 : i64, scratch_operands = 0 : i64, tpu.core_type = #tpu.core_type<tc>, window_params = [{transform_indices = @transform_0, window_bounds = array<i64: 104, 256>}, {pipeline_mode = #tpu.pipeline_mode<synchronous>, transform_indices = @transform_1, window_bounds = array<i64: 256, 128>}, {pipeline_mode = #tpu.pipeline_mode<synchronous>, transform_indices = @transform_2, window_bounds = array<i64: 1, 128>}, {pipeline_mode = #tpu.pipeline_mode<synchronous>, transform_indices = @transform_3, window_bounds = array<i64: 128, 128>}, {pipeline_mode = #tpu.pipeline_mode<synchronous>, transform_indices = @transform_4, window_bounds = array<i64: 1, 128>}, {pipeline_mode = #tpu.pipeline_mode<synchronous>, transform_indices = @transform_5, window_bounds = array<i64: 128, 128>}, {pipeline_mode = #tpu.pipeline_mode<synchronous>, transform_indices = @transform_6, window_bounds = array<i64: 1, 128>}, {pipeline_mode = #tpu.pipeline_mode<synchronous>, transform_indices = @transform_7, window_bounds = array<i64: 128, 128>}, {pipeline_mode = #tpu.pipeline_mode<synchronous>, transform_indices = @transform_8, window_bounds = array<i64: 1, 128>}, {pipeline_mode = #tpu.pipeline_mode<synchronous>, transform_indices = @transform_9, window_bounds = array<i64: 128, 128>}, {pipeline_mode = #tpu.pipeline_mode<synchronous>, transform_indices = @transform_10, window_bounds = array<i64: 1, 128>}, {pipeline_mode = #tpu.pipeline_mode<synchronous>, transform_indices = @transform_11, window_bounds = array<i64: 128, 256>}, {pipeline_mode = #tpu.pipeline_mode<synchronous>, transform_indices = @transform_12, window_bounds = array<i64: 1, 256>}, {transform_indices = @transform_13, window_bounds = array<i64: 104, 256>}, {transform_indices = @transform_14, window_bounds = array<i64: 104, 16>}]} {
    %c0 = arith.constant 0 : index
    %c0_0 = arith.constant 0 : index
    %0 = vector.load %arg1[%c0, %c0_0] : memref<104x256xf32, #tpu.memory_space<vmem>>, vector<104x256xf32>
    %1 = arith.truncf %0 : vector<104x256xf32> to vector<104x256xbf16>
    %c0_1 = arith.constant 0 : index
    %c0_2 = arith.constant 0 : index
    %2 = vector.load %arg2[%c0_1, %c0_2] : memref<256x128xbf16, #tpu.memory_space<vmem>>, vector<256x128xbf16>
    %cst = arith.constant dense<0.000000e+00> : vector<104x128xf32>
    %3 = tpu.matmul %1, %2, %cst {dimension_numbers = #tpu.dot_dimension_numbers<[1], [0], [0], [1], [0, 0, 1, 1], [], []>} : vector<104x256xbf16>, vector<256x128xbf16>, vector<104x128xf32> -> vector<104x128xf32>
    %c0_3 = arith.constant 0 : index
    %c0_4 = arith.constant 0 : index
    %4 = vector.load %arg3[%c0_3, %c0_4] : memref<1x128xf32, #tpu.memory_space<vmem>>, vector<1x128xf32>
    %5 = vector.broadcast %4 : vector<1x128xf32> to vector<104x128xf32>
    %6 = arith.addf %3, %5 : vector<104x128xf32>
    %cst_5 = arith.constant 2.000000e-01 : f32
    %7 = vector.broadcast %cst_5 : f32 to vector<104x128xf32>
    %8 = arith.mulf %7, %6 : vector<104x128xf32>
    %9 = arith.maximumf %6, %8 : vector<104x128xf32>
    %10 = arith.truncf %9 : vector<104x128xf32> to vector<104x128xbf16>
    %c0_6 = arith.constant 0 : index
    %c0_7 = arith.constant 0 : index
    %11 = vector.load %arg4[%c0_6, %c0_7] : memref<128x128xbf16, #tpu.memory_space<vmem>>, vector<128x128xbf16>
    %cst_8 = arith.constant dense<0.000000e+00> : vector<104x128xf32>
    %12 = tpu.matmul %10, %11, %cst_8 {dimension_numbers = #tpu.dot_dimension_numbers<[1], [0], [0], [1], [0, 0, 1, 1], [], []>} : vector<104x128xbf16>, vector<128x128xbf16>, vector<104x128xf32> -> vector<104x128xf32>
    %c0_9 = arith.constant 0 : index
    %c0_10 = arith.constant 0 : index
    %13 = vector.load %arg5[%c0_9, %c0_10] : memref<1x128xf32, #tpu.memory_space<vmem>>, vector<1x128xf32>
    %14 = vector.broadcast %13 : vector<1x128xf32> to vector<104x128xf32>
    %15 = arith.addf %12, %14 : vector<104x128xf32>
    %cst_11 = arith.constant 2.000000e-01 : f32
    %16 = vector.broadcast %cst_11 : f32 to vector<104x128xf32>
    %17 = arith.mulf %16, %15 : vector<104x128xf32>
    %18 = arith.maximumf %15, %17 : vector<104x128xf32>
    %19 = arith.truncf %18 : vector<104x128xf32> to vector<104x128xbf16>
    %c0_12 = arith.constant 0 : index
    %c0_13 = arith.constant 0 : index
    %20 = vector.load %arg6[%c0_12, %c0_13] : memref<128x128xbf16, #tpu.memory_space<vmem>>, vector<128x128xbf16>
    %cst_14 = arith.constant dense<0.000000e+00> : vector<104x128xf32>
    %21 = tpu.matmul %19, %20, %cst_14 {dimension_numbers = #tpu.dot_dimension_numbers<[1], [0], [0], [1], [0, 0, 1, 1], [], []>} : vector<104x128xbf16>, vector<128x128xbf16>, vector<104x128xf32> -> vector<104x128xf32>
    %c0_15 = arith.constant 0 : index
    %c0_16 = arith.constant 0 : index
    %22 = vector.load %arg7[%c0_15, %c0_16] : memref<1x128xf32, #tpu.memory_space<vmem>>, vector<1x128xf32>
    %23 = vector.broadcast %22 : vector<1x128xf32> to vector<104x128xf32>
    %24 = arith.addf %21, %23 : vector<104x128xf32>
    %cst_17 = arith.constant 2.000000e-01 : f32
    %25 = vector.broadcast %cst_17 : f32 to vector<104x128xf32>
    %26 = arith.mulf %25, %24 : vector<104x128xf32>
    %27 = arith.maximumf %24, %26 : vector<104x128xf32>
    %28 = vector.extract_strided_slice %27 {offsets = [0, 0], sizes = [104, 16], strides = [1, 1]} : vector<104x128xf32> to vector<104x16xf32>
    %c0_18 = arith.constant 0 : index
    %c0_19 = arith.constant 0 : index
    %29 = vector.load %arg15[%c0_18, %c0_19] : memref<104x16xf32, #tpu.memory_space<vmem>>, vector<104x16xf32>
    tpu.vector_store %arg15[%c0_18, %c0_19], %28 {strides = array<i32>} : memref<104x16xf32, #tpu.memory_space<vmem>>, vector<104x16xf32>,
    %30 = arith.truncf %27 : vector<104x128xf32> to vector<104x128xbf16>
    %c0_20 = arith.constant 0 : index
    %c0_21 = arith.constant 0 : index
    %31 = vector.load %arg8[%c0_20, %c0_21] : memref<128x128xbf16, #tpu.memory_space<vmem>>, vector<128x128xbf16>
    %cst_22 = arith.constant dense<0.000000e+00> : vector<104x128xf32>
    %32 = tpu.matmul %30, %31, %cst_22 {dimension_numbers = #tpu.dot_dimension_numbers<[1], [0], [0], [1], [0, 0, 1, 1], [], []>} : vector<104x128xbf16>, vector<128x128xbf16>, vector<104x128xf32> -> vector<104x128xf32>
    %c0_23 = arith.constant 0 : index
    %c0_24 = arith.constant 0 : index
    %33 = vector.load %arg9[%c0_23, %c0_24] : memref<1x128xf32, #tpu.memory_space<vmem>>, vector<1x128xf32>
    %34 = vector.broadcast %33 : vector<1x128xf32> to vector<104x128xf32>
    %35 = arith.addf %32, %34 : vector<104x128xf32>
    %cst_25 = arith.constant 2.000000e-01 : f32
    %36 = vector.broadcast %cst_25 : f32 to vector<104x128xf32>
    %37 = arith.mulf %36, %35 : vector<104x128xf32>
    %38 = arith.maximumf %35, %37 : vector<104x128xf32>
    %39 = arith.truncf %38 : vector<104x128xf32> to vector<104x128xbf16>
    %c0_26 = arith.constant 0 : index
    %c0_27 = arith.constant 0 : index
    %40 = vector.load %arg10[%c0_26, %c0_27] : memref<128x128xbf16, #tpu.memory_space<vmem>>, vector<128x128xbf16>
    %cst_28 = arith.constant dense<0.000000e+00> : vector<104x128xf32>
    %41 = tpu.matmul %39, %40, %cst_28 {dimension_numbers = #tpu.dot_dimension_numbers<[1], [0], [0], [1], [0, 0, 1, 1], [], []>} : vector<104x128xbf16>, vector<128x128xbf16>, vector<104x128xf32> -> vector<104x128xf32>
    %c0_29 = arith.constant 0 : index
    %c0_30 = arith.constant 0 : index
    %42 = vector.load %arg11[%c0_29, %c0_30] : memref<1x128xf32, #tpu.memory_space<vmem>>, vector<1x128xf32>
    %43 = vector.broadcast %42 : vector<1x128xf32> to vector<104x128xf32>
    %44 = arith.addf %41, %43 : vector<104x128xf32>
    %cst_31 = arith.constant 2.000000e-01 : f32
    %45 = vector.broadcast %cst_31 : f32 to vector<104x128xf32>
    %46 = arith.mulf %45, %44 : vector<104x128xf32>
    %47 = arith.maximumf %44, %46 : vector<104x128xf32>
    %48 = arith.truncf %47 : vector<104x128xf32> to vector<104x128xbf16>
    %c0_32 = arith.constant 0 : index
    %c0_33 = arith.constant 0 : index
    %49 = vector.load %arg12[%c0_32, %c0_33] : memref<128x256xbf16, #tpu.memory_space<vmem>>, vector<128x256xbf16>
    %cst_34 = arith.constant dense<0.000000e+00> : vector<104x256xf32>
    %50 = tpu.matmul %48, %49, %cst_34 {dimension_numbers = #tpu.dot_dimension_numbers<[1], [0], [0], [1], [0, 0, 1, 1], [], []>} : vector<104x128xbf16>, vector<128x256xbf16>, vector<104x256xf32> -> vector<104x256xf32>
    %c0_35 = arith.constant 0 : index
    %c0_36 = arith.constant 0 : index
    %51 = vector.load %arg13[%c0_35, %c0_36] : memref<1x256xf32, #tpu.memory_space<vmem>>, vector<1x256xf32>
    %52 = vector.broadcast %51 : vector<1x256xf32> to vector<104x256xf32>
    %53 = arith.addf %50, %52 : vector<104x256xf32>
    %cst_37 = arith.constant 2.000000e-01 : f32
    %54 = vector.broadcast %cst_37 : f32 to vector<104x256xf32>
    %55 = arith.mulf %54, %53 : vector<104x256xf32>
    %56 = arith.maximumf %53, %55 : vector<104x256xf32>
    %57 = arith.truncf %56 : vector<104x256xf32> to vector<104x256xbf16>
    %c0_38 = arith.constant 0 : index
    %c0_39 = arith.constant 0 : index
    %58 = vector.load %arg14[%c0_38, %c0_39] : memref<104x256xbf16, #tpu.memory_space<vmem>>, vector<104x256xbf16>
    tpu.vector_store %arg14[%c0_38, %c0_39], %57 {strides = array<i32>} : memref<104x256xbf16, #tpu.memory_space<vmem>>, vector<104x256xbf16>,
    return
  }
  func.func @transform_0(%arg0: i32) -> (i32, i32) {
    %c0_i32 = arith.constant 0 : i32
    %c0_i32_0 = arith.constant 0 : i32
    return %arg0, %c0_i32 : i32, i32
  }
  func.func @transform_1(%arg0: i32) -> (i32, i32) {
    %c0_i32 = arith.constant 0 : i32
    %c0_i32_0 = arith.constant 0 : i32
    %c0_i32_1 = arith.constant 0 : i32
    return %c0_i32, %c0_i32_0 : i32, i32
  }
  func.func @transform_2(%arg0: i32) -> (i32, i32) {
    %c0_i32 = arith.constant 0 : i32
    %c0_i32_0 = arith.constant 0 : i32
    %c0_i32_1 = arith.constant 0 : i32
    return %c0_i32, %c0_i32_0 : i32, i32
  }
  func.func @transform_3(%arg0: i32) -> (i32, i32) {
    %c0_i32 = arith.constant 0 : i32
    %c0_i32_0 = arith.constant 0 : i32
    %c0_i32_1 = arith.constant 0 : i32
    return %c0_i32, %c0_i32_0 : i32, i32
  }
  func.func @transform_4(%arg0: i32) -> (i32, i32) {
    %c0_i32 = arith.constant 0 : i32
    %c0_i32_0 = arith.constant 0 : i32
    %c0_i32_1 = arith.constant 0 : i32
    return %c0_i32, %c0_i32_0 : i32, i32
  }
  func.func @transform_5(%arg0: i32) -> (i32, i32) {
    %c0_i32 = arith.constant 0 : i32
    %c0_i32_0 = arith.constant 0 : i32
    %c0_i32_1 = arith.constant 0 : i32
    return %c0_i32, %c0_i32_0 : i32, i32
  }
  func.func @transform_6(%arg0: i32) -> (i32, i32) {
    %c0_i32 = arith.constant 0 : i32
    %c0_i32_0 = arith.constant 0 : i32
    %c0_i32_1 = arith.constant 0 : i32
    return %c0_i32, %c0_i32_0 : i32, i32
  }
  func.func @transform_7(%arg0: i32) -> (i32, i32) {
    %c0_i32 = arith.constant 0 : i32
    %c0_i32_0 = arith.constant 0 : i32
    %c0_i32_1 = arith.constant 0 : i32
    return %c0_i32, %c0_i32_0 : i32, i32
  }
  func.func @transform_8(%arg0: i32) -> (i32, i32) {
    %c0_i32 = arith.constant 0 : i32
    %c0_i32_0 = arith.constant 0 : i32
    %c0_i32_1 = arith.constant 0 : i32
    return %c0_i32, %c0_i32_0 : i32, i32
  }
  func.func @transform_9(%arg0: i32) -> (i32, i32) {
    %c0_i32 = arith.constant 0 : i32
    %c0_i32_0 = arith.constant 0 : i32
    %c0_i32_1 = arith.constant 0 : i32
    return %c0_i32, %c0_i32_0 : i32, i32
  }
  func.func @transform_10(%arg0: i32) -> (i32, i32) {
    %c0_i32 = arith.constant 0 : i32
    %c0_i32_0 = arith.constant 0 : i32
    %c0_i32_1 = arith.constant 0 : i32
    return %c0_i32, %c0_i32_0 : i32, i32
  }
  func.func @transform_11(%arg0: i32) -> (i32, i32) {
    %c0_i32 = arith.constant 0 : i32
    %c0_i32_0 = arith.constant 0 : i32
    %c0_i32_1 = arith.constant 0 : i32
    return %c0_i32, %c0_i32_0 : i32, i32
  }
  func.func @transform_12(%arg0: i32) -> (i32, i32) {
    %c0_i32 = arith.constant 0 : i32
    %c0_i32_0 = arith.constant 0 : i32
    %c0_i32_1 = arith.constant 0 : i32
    return %c0_i32, %c0_i32_0 : i32, i32
  }
  func.func @transform_13(%arg0: i32) -> (i32, i32) {
    %c0_i32 = arith.constant 0 : i32
    %c0_i32_0 = arith.constant 0 : i32
    return %arg0, %c0_i32 : i32, i32
  }
  func.func @transform_14(%arg0: i32) -> (i32, i32) {
    %c0_i32 = arith.constant 0 : i32
    %c0_i32_0 = arith.constant 0 : i32
    return %arg0, %c0_i32 : i32, i32
  }
}

</mosaic_0001>

<llo_original>
// kernel: fcae_forward.1
$region0: #{fcae_forward.1}
  #allocation0 [shape = 'u32[]', space=smem, size = 0x4, offset = 0x4, fixed_abs, tag = 'smem constant byte address 0x4 - core index']
  #allocation1 [shape = 'u32[144,128]{1,0:T(1,128)}', space=vmem, size = 0x12000, scoped, tag = 'internal scratch']
  %s0 = inlined_call_operand.hbm [shape: f32[200,256], index: 0, kind: input, shape index: {}]
  %s1 = inlined_call_operand.hbm [shape: bf16[256,128], index: 1, kind: input, shape index: {}]
  %s2 = inlined_call_operand.vmem [shape: f32[1,128], index: 2, kind: input, shape index: {}]
  %s3 = inlined_call_operand.hbm [shape: bf16[128,128], index: 3, kind: input, shape index: {}]
  %s4 = inlined_call_operand.vmem [shape: f32[1,128], index: 4, kind: input, shape index: {}]
  %s5 = inlined_call_operand.hbm [shape: bf16[128,128], index: 5, kind: input, shape index: {}]
  %s6 = inlined_call_operand.vmem [shape: f32[1,128], index: 6, kind: input, shape index: {}]
  %s7 = inlined_call_operand.hbm [shape: bf16[128,128], index: 7, kind: input, shape index: {}]
  %s8 = inlined_call_operand.vmem [shape: f32[1,128], index: 8, kind: input, shape index: {}]
  %s9 = inlined_call_operand.hbm [shape: bf16[128,128], index: 9, kind: input, shape index: {}]
  %s10 = inlined_call_operand.vmem [shape: f32[1,128], index: 10, kind: input, shape index: {}]
  %s11 = inlined_call_operand.hbm [shape: bf16[128,256], index: 11, kind: input, shape index: {}]
  %s12 = inlined_call_operand.vmem [shape: f32[1,256], index: 12, kind: input, shape index: {}]
  %s13 = inlined_call_operand.hbm [shape: bf16[200,256], index: 13, kind: output, shape index: {0}]
  %s14 = inlined_call_operand.vmem [shape: f32[200,16], index: 14, kind: output, shape index: {1}]
  %15 = xla_tuple %s13, %s14
  %s16 = sld [smem:[#allocation0]]
  $region169: #{fcae_forward.1} parent=0
    _
  %s18 = ssub.s32 1, %s16
  %s19 = scalar_select 0, %s18, %s16
  $region1: #{fcae_forward.1} parent=0
    #allocation2 [shape = 'u8[212992]{0}', space=vmem, size = 0x34000, scoped, tag = 'input window, operand 0']
    #allocation3 [shape = 's32[2]{0}', space=sflag, size = 0x8, scoped, tag = 'scoped memory for fcae_forward.1']
    #allocation4 [shape = 's32[2]{0}', space=sflag, size = 0x8, scoped, tag = 'scoped memory for fcae_forward.1']
    #allocation5 [shape = 'u8[65536]{0}', space=vmem, size = 0x10000, scoped, tag = 'input window, operand 1, single buffered']
    #allocation6 [shape = 's32[1]{0}', space=sflag, size = 0x4, scoped, tag = 'scoped memory for fcae_forward.1']
    #allocation7 [shape = 'u8[32768]{0}', space=vmem, size = 0x8000, scoped, tag = 'input window, operand 3, single buffered']
    #allocation8 [shape = 'u8[32768]{0}', space=vmem, size = 0x8000, scoped, tag = 'input window, operand 5, single buffered']
    #allocation9 [shape = 's32[1]{0}', space=sflag, size = 0x4, scoped, tag = 'scoped memory for fcae_forward.1']
    #allocation10 [shape = 'u8[32768]{0}', space=vmem, size = 0x8000, scoped, tag = 'input window, operand 7, single buffered']
    #allocation11 [shape = 'u8[32768]{0}', space=vmem, size = 0x8000, scoped, tag = 'input window, operand 9, single buffered']
    #allocation12 [shape = 's32[1]{0}', space=sflag, size = 0x4, scoped, tag = 'scoped memory for fcae_forward.1']
    #allocation13 [shape = 'u8[65536]{0}', space=vmem, size = 0x10000, scoped, tag = 'input window, operand 11, single buffered']
    #allocation14 [shape = 'u8[106496]{0}', space=vmem, size = 0x1a000, scoped, tag = 'output window, operand 0']
    #allocation15 [shape = 'u8[106496]{0}', space=vmem, size = 0x1a000, scoped, tag = 'output window, operand 1']
    %20 = vsyncpa [#allocation3], 0
    %s21 = scalar_lea.sflag [#allocation3], 1
    %22 = vsyncpa %s21, 0
    %23 = vsyncpa [#allocation6], 0
    %24 = vsyncpa [#allocation9], 0
    %25 = vsyncpa [#allocation12], 0
    %26 = vsyncpa [#allocation4], 0
    %s27 = scalar_lea.sflag [#allocation4], 1
    %28 = vsyncpa %s27, 0
    loop: start=0, step=1, limit=4
    $region2: #{fcae_forward.1} parent=1 // loop_pre_header
      _
    $region3: #{fcae_forward.1} parent=1 // loop_header
      %s30 = sphi 0, %s34
      %p31 = scmp.ge.s32.totalorder %s30, 4
      %s40 = sphi 0, %s42
      %s43 = sphi 0, %s40
      %s44 = sphi 0, %s43
      %s60 = sphi 0, %s44
      %s64 = sphi 0, %s64
      %s66 = sphi 0, %s64
      %s67 = sphi 0, %s66
      %s81 = sphi 0, %s67
      %s85 = sphi 0, %s85
      %s87 = sphi 0, %s85
      %s88 = sphi 0, %s87
      %s102 = sphi 0, %s88
      %s106 = sphi 0, %s106
      %s108 = sphi 0, %s106
      %s109 = sphi 0, %s108
      %s123 = sphi 0, %s109
      %s127 = sphi 0, %s127
      %s129 = sphi 0, %s127
      %s130 = sphi 0, %s129
      %s144 = sphi 0, %s130
      %s148 = sphi 0, %s148
      %s150 = sphi 0, %s148
      %s151 = sphi 0, %s150
      %s165 = sphi 0, %s151
      %s169 = sphi 0, %s169
      %s171 = sphi 0, %s169
      %s172 = sphi 0, %s171
      %s186 = sphi 0, %s172
      %s190 = sphi 0, %s190
      %s192 = sphi 0, %s190
      %s193 = sphi 0, %s192
      %s207 = sphi 0, %s193
      %s211 = sphi 0, %s211
      %s213 = sphi 0, %s211
      %s214 = sphi 0, %s213
      %s228 = sphi 0, %s214
      %s232 = sphi 0, %s232
      %s234 = sphi 0, %s232
      %s235 = sphi 0, %s234
      %s249 = sphi 0, %s235
      %s253 = sphi 0, %s253
      %s255 = sphi 0, %s253
      %s256 = sphi 0, %s255
      %s270 = sphi 0, %s256
      %s274 = sphi 0, %s274
      %s276 = sphi 0, %s274
      %s277 = sphi 0, %s276
      %s291 = sphi 0, %s277
      %s295 = sphi 0, %s295
      %s297 = sphi 0, %s295
      %s298 = sphi 0, %s297
      %s312 = sphi 0, %s298
      %s318 = sphi 0, %s320
      %s321 = sphi 0, %s318
      %s322 = sphi 0, %s321
      %s338 = sphi 0, %s322
      %s344 = sphi 0, %s346
      %s347 = sphi 0, %s344
      %s348 = sphi 0, %s347
      %s364 = sphi 0, %s348
    $region4: #{fcae_forward.1} parent=1 // loop_header_branch
      %33 = sbr.rel (%p31) target = $region8
    $region5: #{fcae_forward.1} parent=1 // loop_body
      %s35 = ssub.s32 %s30, 1
      %s36 = ssub.s32 %s30, 2
      %s37 = sadd.s32 %s30, 1
      %s38 = ssub.s32 %s30, %s37
      %p39 = scmp.eq.s32.totalorder %s38, 0
      %s41 = sadd.s32 %s40, 1
      %s42 = scalar_select %p39, %s40, %s41
      %p45 = pneg %p39
      %p46 = scmp.eq.s32.totalorder %s30, 1
      %p47 = por %p45, %p46
      %p48 = scmp.ne.s32.totalorder %s40, %s43
      %p49 = scmp.eq.s32.totalorder %s30, 0
      %p50 = por %p48, %p49
      %p51 = scmp.ne.s32.totalorder %s40, %s43
      %p52 = scmp.eq.s32.totalorder %s35, 1
      %p53 = por %p51, %p52
      %p54 = scmp.ne.s32.totalorder %s43, %s44
      %p55 = scmp.eq.s32.totalorder %s35, 0
      %p56 = por %p54, %p55
      %p57 = scmp.ne.s32.totalorder %s43, %s44
      %p58 = scmp.eq.s32.totalorder %s36, 1
      %p59 = por %p57, %p58
      %p61 = scmp.ne.s32.totalorder %s44, %s60
      %p62 = scmp.eq.s32.totalorder %s36, 0
      %p63 = por %p61, %p62
      %s65 = sadd.s32 %s64, 1
      %p68 = scmp.eq.s32.totalorder %s30, 1
      %p69 = scmp.ne.s32.totalorder %s64, %s66
      %p70 = scmp.eq.s32.totalorder %s30, 0
      %p71 = por %p69, %p70
      %p72 = scmp.ne.s32.totalorder %s64, %s66
      %p73 = scmp.eq.s32.totalorder %s35, 1
      %p74 = por %p72, %p73
      %p75 = scmp.ne.s32.totalorder %s66, %s67
      %p76 = scmp.eq.s32.totalorder %s35, 0
      %p77 = por %p75, %p76
      %p78 = scmp.ne.s32.totalorder %s66, %s67
      %p79 = scmp.eq.s32.totalorder %s36, 1
      %p80 = por %p78, %p79
      %p82 = scmp.ne.s32.totalorder %s67, %s81
      %p83 = scmp.eq.s32.totalorder %s36, 0
      %p84 = por %p82, %p83
      %s86 = sadd.s32 %s85, 1
      %p89 = scmp.eq.s32.totalorder %s30, 1
      %p90 = scmp.ne.s32.totalorder %s85, %s87
      %p91 = scmp.eq.s32.totalorder %s30, 0
      %p92 = por %p90, %p91
      %p93 = scmp.ne.s32.totalorder %s85, %s87
      %p94 = scmp.eq.s32.totalorder %s35, 1
      %p95 = por %p93, %p94
      %p96 = scmp.ne.s32.totalorder %s87, %s88
      %p97 = scmp.eq.s32.totalorder %s35, 0
      %p98 = por %p96, %p97
      %p99 = scmp.ne.s32.totalorder %s87, %s88
      %p100 = scmp.eq.s32.totalorder %s36, 1
      %p101 = por %p99, %p100
      %p103 = scmp.ne.s32.totalorder %s88, %s102
      %p104 = scmp.eq.s32.totalorder %s36, 0
      %p105 = por %p103, %p104
      %s107 = sadd.s32 %s106, 1
      %p110 = scmp.eq.s32.totalorder %s30, 1
      %p111 = scmp.ne.s32.totalorder %s106, %s108
      %p112 = scmp.eq.s32.totalorder %s30, 0
      %p113 = por %p111, %p112
      %p114 = scmp.ne.s32.totalorder %s106, %s108
      %p115 = scmp.eq.s32.totalorder %s35, 1
      %p116 = por %p114, %p115
      %p117 = scmp.ne.s32.totalorder %s108, %s109
      %p118 = scmp.eq.s32.totalorder %s35, 0
      %p119 = por %p117, %p118
      %p120 = scmp.ne.s32.totalorder %s108, %s109
      %p121 = scmp.eq.s32.totalorder %s36, 1
      %p122 = por %p120, %p121
      %p124 = scmp.ne.s32.totalorder %s109, %s123
      %p125 = scmp.eq.s32.totalorder %s36, 0
      %p126 = por %p124, %p125
      %s128 = sadd.s32 %s127, 1
      %p131 = scmp.eq.s32.totalorder %s30, 1
      %p132 = scmp.ne.s32.totalorder %s127, %s129
      %p133 = scmp.eq.s32.totalorder %s30, 0
      %p134 = por %p132, %p133
      %p135 = scmp.ne.s32.totalorder %s127, %s129
      %p136 = scmp.eq.s32.totalorder %s35, 1
      %p137 = por %p135, %p136
      %p138 = scmp.ne.s32.totalorder %s129, %s130
      %p139 = scmp.eq.s32.totalorder %s35, 0
      %p140 = por %p138, %p139
      %p141 = scmp.ne.s32.totalorder %s129, %s130
      %p142 = scmp.eq.s32.totalorder %s36, 1
      %p143 = por %p141, %p142
      %p145 = scmp.ne.s32.totalorder %s130, %s144
      %p146 = scmp.eq.s32.totalorder %s36, 0
      %p147 = por %p145, %p146
      %s149 = sadd.s32 %s148, 1
      %p152 = scmp.eq.s32.totalorder %s30, 1
      %p153 = scmp.ne.s32.totalorder %s148, %s150
      %p154 = scmp.eq.s32.totalorder %s30, 0
      %p155 = por %p153, %p154
      %p156 = scmp.ne.s32.totalorder %s148, %s150
      %p157 = scmp.eq.s32.totalorder %s35, 1
      %p158 = por %p156, %p157
      %p159 = scmp.ne.s32.totalorder %s150, %s151
      %p160 = scmp.eq.s32.totalorder %s35, 0
      %p161 = por %p159, %p160
      %p162 = scmp.ne.s32.totalorder %s150, %s151
      %p163 = scmp.eq.s32.totalorder %s36, 1
      %p164 = por %p162, %p163
      %p166 = scmp.ne.s32.totalorder %s151, %s165
      %p167 = scmp.eq.s32.totalorder %s36, 0
      %p168 = por %p166, %p167
      %s170 = sadd.s32 %s169, 1
      %p173 = scmp.eq.s32.totalorder %s30, 1
      %p174 = scmp.ne.s32.totalorder %s169, %s171
      %p175 = scmp.eq.s32.totalorder %s30, 0
      %p176 = por %p174, %p175
      %p177 = scmp.ne.s32.totalorder %s169, %s171
      %p178 = scmp.eq.s32.totalorder %s35, 1
      %p179 = por %p177, %p178
      %p180 = scmp.ne.s32.totalorder %s171, %s172
      %p181 = scmp.eq.s32.totalorder %s35, 0
      %p182 = por %p180, %p181
      %p183 = scmp.ne.s32.totalorder %s171, %s172
      %p184 = scmp.eq.s32.totalorder %s36, 1
      %p185 = por %p183, %p184
      %p187 = scmp.ne.s32.totalorder %s172, %s186
      %p188 = scmp.eq.s32.totalorder %s36, 0
      %p189 = por %p187, %p188
      %s191 = sadd.s32 %s190, 1
      %p194 = scmp.eq.s32.totalorder %s30, 1
      %p195 = scmp.ne.s32.totalorder %s190, %s192
      %p196 = scmp.eq.s32.totalorder %s30, 0
      %p197 = por %p195, %p196
      %p198 = scmp.ne.s32.totalorder %s190, %s192
      %p199 = scmp.eq.s32.totalorder %s35, 1
      %p200 = por %p198, %p199
      %p201 = scmp.ne.s32.totalorder %s192, %s193
      %p202 = scmp.eq.s32.totalorder %s35, 0
      %p203 = por %p201, %p202
      %p204 = scmp.ne.s32.totalorder %s192, %s193
      %p205 = scmp.eq.s32.totalorder %s36, 1
      %p206 = por %p204, %p205
      %p208 = scmp.ne.s32.totalorder %s193, %s207
      %p209 = scmp.eq.s32.totalorder %s36, 0
      %p210 = por %p208, %p209
      %s212 = sadd.s32 %s211, 1
      %p215 = scmp.eq.s32.totalorder %s30, 1
      %p216 = scmp.ne.s32.totalorder %s211, %s213
      %p217 = scmp.eq.s32.totalorder %s30, 0
      %p218 = por %p216, %p217
      %p219 = scmp.ne.s32.totalorder %s211, %s213
      %p220 = scmp.eq.s32.totalorder %s35, 1
      %p221 = por %p219, %p220
      %p222 = scmp.ne.s32.totalorder %s213, %s214
      %p223 = scmp.eq.s32.totalorder %s35, 0
      %p224 = por %p222, %p223
      %p225 = scmp.ne.s32.totalorder %s213, %s214
      %p226 = scmp.eq.s32.totalorder %s36, 1
      %p227 = por %p225, %p226
      %p229 = scmp.ne.s32.totalorder %s214, %s228
      %p230 = scmp.eq.s32.totalorder %s36, 0
      %p231 = por %p229, %p230
      %s233 = sadd.s32 %s232, 1
      %p236 = scmp.eq.s32.totalorder %s30, 1
      %p237 = scmp.ne.s32.totalorder %s232, %s234
      %p238 = scmp.eq.s32.totalorder %s30, 0
      %p239 = por %p237, %p238
      %p240 = scmp.ne.s32.totalorder %s232, %s234
      %p241 = scmp.eq.s32.totalorder %s35, 1
      %p242 = por %p240, %p241
      %p243 = scmp.ne.s32.totalorder %s234, %s235
      %p244 = scmp.eq.s32.totalorder %s35, 0
      %p245 = por %p243, %p244
      %p246 = scmp.ne.s32.totalorder %s234, %s235
      %p247 = scmp.eq.s32.totalorder %s36, 1
      %p248 = por %p246, %p247
      %p250 = scmp.ne.s32.totalorder %s235, %s249
      %p251 = scmp.eq.s32.totalorder %s36, 0
      %p252 = por %p250, %p251
      %s254 = sadd.s32 %s253, 1
      %p257 = scmp.eq.s32.totalorder %s30, 1
      %p258 = scmp.ne.s32.totalorder %s253, %s255
      %p259 = scmp.eq.s32.totalorder %s30, 0
      %p260 = por %p258, %p259
      %p261 = scmp.ne.s32.totalorder %s253, %s255
      %p262 = scmp.eq.s32.totalorder %s35, 1
      %p263 = por %p261, %p262
      %p264 = scmp.ne.s32.totalorder %s255, %s256
      %p265 = scmp.eq.s32.totalorder %s35, 0
      %p266 = por %p264, %p265
      %p267 = scmp.ne.s32.totalorder %s255, %s256
      %p268 = scmp.eq.s32.totalorder %s36, 1
      %p269 = por %p267, %p268
      %p271 = scmp.ne.s32.totalorder %s256, %s270
      %p272 = scmp.eq.s32.totalorder %s36, 0
      %p273 = por %p271, %p272
      %s275 = sadd.s32 %s274, 1
      %p278 = scmp.eq.s32.totalorder %s30, 1
      %p279 = scmp.ne.s32.totalorder %s274, %s276
      %p280 = scmp.eq.s32.totalorder %s30, 0
      %p281 = por %p279, %p280
      %p282 = scmp.ne.s32.totalorder %s274, %s276
      %p283 = scmp.eq.s32.totalorder %s35, 1
      %p284 = por %p282, %p283
      %p285 = scmp.ne.s32.totalorder %s276, %s277
      %p286 = scmp.eq.s32.totalorder %s35, 0
      %p287 = por %p285, %p286
      %p288 = scmp.ne.s32.totalorder %s276, %s277
      %p289 = scmp.eq.s32.totalorder %s36, 1
      %p290 = por %p288, %p289
      %p292 = scmp.ne.s32.totalorder %s277, %s291
      %p293 = scmp.eq.s32.totalorder %s36, 0
      %p294 = por %p292, %p293
      %s296 = sadd.s32 %s295, 1
      %p299 = scmp.eq.s32.totalorder %s30, 1
      %p300 = scmp.ne.s32.totalorder %s295, %s297
      %p301 = scmp.eq.s32.totalorder %s30, 0
      %p302 = por %p300, %p301
      %p303 = scmp.ne.s32.totalorder %s295, %s297
      %p304 = scmp.eq.s32.totalorder %s35, 1
      %p305 = por %p303, %p304
      %p306 = scmp.ne.s32.totalorder %s297, %s298
      %p307 = scmp.eq.s32.totalorder %s35, 0
      %p308 = por %p306, %p307
      %p309 = scmp.ne.s32.totalorder %s297, %s298
      %p310 = scmp.eq.s32.totalorder %s36, 1
      %p311 = por %p309, %p310
      %p313 = scmp.ne.s32.totalorder %s298, %s312
      %p314 = scmp.eq.s32.totalorder %s36, 0
      %p315 = por %p313, %p314
      %s316 = ssub.s32 %s30, %s37
      %p317 = scmp.eq.s32.totalorder %s316, 0
      %s319 = sadd.s32 %s318, 1
      %s320 = scalar_select %p317, %s318, %s319
      %p323 = pneg %p317
      %p324 = scmp.eq.s32.totalorder %s30, 1
      %p325 = por %p323, %p324
      %p326 = scmp.ne.s32.totalorder %s318, %s321
      %p327 = scmp.eq.s32.totalorder %s30, 0
      %p328 = por %p326, %p327
      %p329 = scmp.ne.s32.totalorder %s318, %s321
      %p330 = scmp.eq.s32.totalorder %s35, 1
      %p331 = por %p329, %p330
      %p332 = scmp.ne.s32.totalorder %s321, %s322
      %p333 = scmp.eq.s32.totalorder %s35, 0
      %p334 = por %p332, %p333
      %p335 = scmp.ne.s32.totalorder %s321, %s322
      %p336 = scmp.eq.s32.totalorder %s36, 1
      %p337 = por %p335, %p336
      %p339 = scmp.ne.s32.totalorder %s322, %s338
      %p340 = scmp.eq.s32.totalorder %s36, 0
      %p341 = por %p339, %p340
      %s342 = ssub.s32 %s30, %s37
      %p343 = scmp.eq.s32.totalorder %s342, 0
      %s345 = sadd.s32 %s344, 1
      %s346 = scalar_select %p343, %s344, %s345
      %p349 = pneg %p343
      %p350 = scmp.eq.s32.totalorder %s30, 1
      %p351 = por %p349, %p350
      %p352 = scmp.ne.s32.totalorder %s344, %s347
      %p353 = scmp.eq.s32.totalorder %s30, 0
      %p354 = por %p352, %p353
      %p355 = scmp.ne.s32.totalorder %s344, %s347
      %p356 = scmp.eq.s32.totalorder %s35, 1
      %p357 = por %p355, %p356
      %p358 = scmp.ne.s32.totalorder %s347, %s348
      %p359 = scmp.eq.s32.totalorder %s35, 0
      %p360 = por %p358, %p359
      %p361 = scmp.ne.s32.totalorder %s347, %s348
      %p362 = scmp.eq.s32.totalorder %s36, 1
      %p363 = por %p361, %p362
      %p365 = scmp.ne.s32.totalorder %s348, %s364
      %p366 = scmp.eq.s32.totalorder %s36, 0
      %p367 = por %p365, %p366
      %p368 = scmp.le.s32.totalorder 1, %s30
      %p369 = scmp.lt.s32.totalorder %s30, 3
      %p370 = pnand %p368, %p369
      %p371 = pneg %p370
      // Predicated region
      $region9: #{fcae_forward.1} parent=5 // pred_check
        _
      $region10: #{fcae_forward.1} parent=5 // pred_check_branch
        %373 = sbr.rel (%p370) target = $region12
      $region11: #{fcae_forward.1} parent=5 // pred_region
        %s374 = ssub.s32 %s30, 1
        // Predicated region
        $region13: #{fcae_forward.1} parent=11 // pred_check
          %p375 = pneg %p77
        $region14: #{fcae_forward.1} parent=11 // pred_check_branch
          %377 = sbr.rel (%p375) target = $region16
        $region15: #{fcae_forward.1} parent=11 // pred_region
          %s379 = ssub.s32 2048, 2048
          %380 = vsyncadd [#allocation6], %s379
          %s381 = sshll.u32 [#allocation5], 4
          %s382 = int_to_ptr.vmem [resolvable:$true] %s381
          %387 = dma.hbm_to_vmem [thread:$0]  %s1, 2048, %s382, [#allocation6], 64, 64, 4
        $region16: #{fcae_forward.1} parent=11 // pred_fallthru
          _
        // Predicated region
        $region17: #{fcae_forward.1} parent=11 // pred_check
          %p388 = pneg %p98
        $region18: #{fcae_forward.1} parent=11 // pred_check_branch
          %390 = sbr.rel (%p388) target = $region20
        $region19: #{fcae_forward.1} parent=11 // pred_region
          _
        $region20: #{fcae_forward.1} parent=11 // pred_fallthru
          _
        // Predicated region
        $region21: #{fcae_forward.1} parent=11 // pred_check
          %p391 = pneg %p119
        $region22: #{fcae_forward.1} parent=11 // pred_check_branch
          %393 = sbr.rel (%p391) target = $region24
        $region23: #{fcae_forward.1} parent=11 // pred_region
          %s395 = ssub.s32 1024, 1024
          %396 = vsyncadd [#allocation6], %s395
          %s397 = sshll.u32 [#allocation7], 4
          %s398 = int_to_ptr.vmem [resolvable:$true] %s397
          %403 = dma.hbm_to_vmem [thread:$0]  %s3, 1024, %s398, [#allocation6], 64, 64, 4
        $region24: #{fcae_forward.1} parent=11 // pred_fallthru
          _
        // Predicated region
        $region25: #{fcae_forward.1} parent=11 // pred_check
          %p404 = pneg %p140
        $region26: #{fcae_forward.1} parent=11 // pred_check_branch
          %406 = sbr.rel (%p404) target = $region28
        $region27: #{fcae_forward.1} parent=11 // pred_region
          _
        $region28: #{fcae_forward.1} parent=11 // pred_fallthru
          _
        // Predicated region
        $region29: #{fcae_forward.1} parent=11 // pred_check
          %p407 = pneg %p161
        $region30: #{fcae_forward.1} parent=11 // pred_check_branch
          %409 = sbr.rel (%p407) target = $region32
        $region31: #{fcae_forward.1} parent=11 // pred_region
          %s411 = ssub.s32 1024, 1024
          %412 = vsyncadd [#allocation9], %s411
          %s413 = sshll.u32 [#allocation8], 4
          %s414 = int_to_ptr.vmem [resolvable:$true] %s413
          %419 = dma.hbm_to_vmem [thread:$0]  %s5, 1024, %s414, [#allocation9], 64, 64, 4
        $region32: #{fcae_forward.1} parent=11 // pred_fallthru
          _
        // Predicated region
        $region33: #{fcae_forward.1} parent=11 // pred_check
          %p420 = pneg %p182
        $region34: #{fcae_forward.1} parent=11 // pred_check_branch
          %422 = sbr.rel (%p420) target = $region36
        $region35: #{fcae_forward.1} parent=11 // pred_region
          _
        $region36: #{fcae_forward.1} parent=11 // pred_fallthru
          _
        // Predicated region
        $region37: #{fcae_forward.1} parent=11 // pred_check
          %p423 = pneg %p203
        $region38: #{fcae_forward.1} parent=11 // pred_check_branch
          %425 = sbr.rel (%p423) target = $region40
        $region39: #{fcae_forward.1} parent=11 // pred_region
          %s427 = ssub.s32 1024, 1024
          %428 = vsyncadd [#allocation9], %s427
          %s429 = sshll.u32 [#allocation10], 4
          %s430 = int_to_ptr.vmem [resolvable:$true] %s429
          %435 = dma.hbm_to_vmem [thread:$0]  %s7, 1024, %s430, [#allocation9], 64, 64, 4
        $region40: #{fcae_forward.1} parent=11 // pred_fallthru
          _
        // Predicated region
        $region41: #{fcae_forward.1} parent=11 // pred_check
          %p436 = pneg %p224
        $region42: #{fcae_forward.1} parent=11 // pred_check_branch
          %438 = sbr.rel (%p436) target = $region44
        $region43: #{fcae_forward.1} parent=11 // pred_region
          _
        $region44: #{fcae_forward.1} parent=11 // pred_fallthru
          _
        // Predicated region
        $region45: #{fcae_forward.1} parent=11 // pred_check
          %p439 = pneg %p245
        $region46: #{fcae_forward.1} parent=11 // pred_check_branch
          %441 = sbr.rel (%p439) target = $region48
        $region47: #{fcae_forward.1} parent=11 // pred_region
          %s443 = ssub.s32 1024, 1024
          %444 = vsyncadd [#allocation12], %s443
          %s445 = sshll.u32 [#allocation11], 4
          %s446 = int_to_ptr.vmem [resolvable:$true] %s445
          %451 = dma.hbm_to_vmem [thread:$0]  %s9, 1024, %s446, [#allocation12], 64, 64, 4
        $region48: #{fcae_forward.1} parent=11 // pred_fallthru
          _
        // Predicated region
        $region49: #{fcae_forward.1} parent=11 // pred_check
          %p452 = pneg %p266
        $region50: #{fcae_forward.1} parent=11 // pred_check_branch
          %454 = sbr.rel (%p452) target = $region52
        $region51: #{fcae_forward.1} parent=11 // pred_region
          _
        $region52: #{fcae_forward.1} parent=11 // pred_fallthru
          _
        // Predicated region
        $region53: #{fcae_forward.1} parent=11 // pred_check
          %p455 = pneg %p287
        $region54: #{fcae_forward.1} parent=11 // pred_check_branch
          %457 = sbr.rel (%p455) target = $region56
        $region55: #{fcae_forward.1} parent=11 // pred_region
          %s459 = ssub.s32 2048, 2048
          %460 = vsyncadd [#allocation12], %s459
          %s461 = sshll.u32 [#allocation13], 4
          %s462 = int_to_ptr.vmem [resolvable:$true] %s461
          %467 = dma.hbm_to_vmem [thread:$0]  %s11, 2048, %s462, [#allocation12], 128, 128, 8
        $region56: #{fcae_forward.1} parent=11 // pred_fallthru
          _
        // Predicated region
        $region57: #{fcae_forward.1} parent=11 // pred_check
          %p468 = pneg %p308
        $region58: #{fcae_forward.1} parent=11 // pred_check_branch
          %470 = sbr.rel (%p468) target = $region60
        $region59: #{fcae_forward.1} parent=11 // pred_region
          _
        $region60: #{fcae_forward.1} parent=11 // pred_fallthru
          _
      $region12: #{fcae_forward.1} parent=5 // pred_fallthru
        _
      %p471 = scmp.lt.s32.totalorder %s30, 2
      // Predicated region
      $region61: #{fcae_forward.1} parent=5 // pred_check
        %p472 = pneg %p471
      $region62: #{fcae_forward.1} parent=5 // pred_check_branch
        %474 = sbr.rel (%p472) target = $region64
      $region63: #{fcae_forward.1} parent=5 // pred_region
        // Predicated region
        $region65: #{fcae_forward.1} parent=63 // pred_check
          %p475 = pneg %p50
        $region66: #{fcae_forward.1} parent=63 // pred_check_branch
          %477 = sbr.rel (%p475) target = $region68
        $region67: #{fcae_forward.1} parent=63 // pred_region
          %s478 = sand.u32 %s40, 1
          %s479 = scalar_lea.sflag [#allocation3], %s478
          %s480 = sand.u32 %s40, 1
          %s481 = smul.addr %s480, 208
          %s482 = scalar_lea.vmem [#allocation2], %s481
          %s483 = smul.u32 13, %s30
          %s484 = ssub.s32 25, %s483
          %p485 = scmp.lt.s32.totalorder %s484, 13
          %s486 = scalar_select %p485, %s484, 13
          %s487 = smul.u32 128, %s486
          %s488 = smul.u32 %s487, 2
          %s490 = ssub.s32 3328, %s488
          %491 = vsyncadd %s479, %s490
          %p492 = scmp.ne.s32.totalorder 0, %s488
          %s493 = smul.addr %s483, 2
          %s494 = smul.addr %s493, 128
          %s495 = scalar_lea.hbm %s0, %s494
          %s496 = smul.u32 16, %s486
          %s497 = sshll.u32 %s482, 4
          %s498 = int_to_ptr.vmem [resolvable:$true] %s497
          %s499 = sshll.u32 %s496, 4
          %503 = dma.hbm_to_vmem [thread:$0]  (%p492), %s495, %s499, %s498, %s479, 256, 256, 16
        $region68: #{fcae_forward.1} parent=63 // pred_fallthru
          _
      $region64: #{fcae_forward.1} parent=5 // pred_fallthru
        _
      %p504 = scmp.le.s32.totalorder 1, %s30
      %p505 = scmp.lt.s32.totalorder %s30, 3
      %p506 = pnand %p504, %p505
      %p507 = pneg %p506
      // Predicated region
      $region69: #{fcae_forward.1} parent=5 // pred_check
        _
      $region70: #{fcae_forward.1} parent=5 // pred_check_branch
        %509 = sbr.rel (%p506) target = $region72
      $region71: #{fcae_forward.1} parent=5 // pred_region
        %s510 = ssub.s32 %s30, 1
        %s511 = sand.u32 %s43, 1
        %s512 = scalar_lea.sflag [#allocation3], %s511
        %s513 = sand.u32 %s43, 1
        %s514 = smul.addr %s513, 208
        %s515 = scalar_lea.vmem [#allocation2], %s514
        // Predicated region
        $region73: #{fcae_forward.1} parent=71 // pred_check
          %p516 = pneg %p56
        $region74: #{fcae_forward.1} parent=71 // pred_check_branch
          %518 = sbr.rel (%p516) target = $region76
        $region75: #{fcae_forward.1} parent=71 // pred_region
          %519 = dma.done %s512, 3328
        $region76: #{fcae_forward.1} parent=71 // pred_fallthru
          _
        // Predicated region
        $region77: #{fcae_forward.1} parent=71 // pred_check
          %p520 = pneg %p77
        $region78: #{fcae_forward.1} parent=71 // pred_check_branch
          %522 = sbr.rel (%p520) target = $region80
        $region79: #{fcae_forward.1} parent=71 // pred_region
          %523 = dma.done [#allocation6], 2048
        $region80: #{fcae_forward.1} parent=71 // pred_fallthru
          _
        // Predicated region
        $region81: #{fcae_forward.1} parent=71 // pred_check
          %p524 = pneg %p119
        $region82: #{fcae_forward.1} parent=71 // pred_check_branch
          %526 = sbr.rel (%p524) target = $region84
        $region83: #{fcae_forward.1} parent=71 // pred_region
          %527 = dma.done [#allocation6], 1024
        $region84: #{fcae_forward.1} parent=71 // pred_fallthru
          _
        // Predicated region
        $region85: #{fcae_forward.1} parent=71 // pred_check
          %p528 = pneg %p161
        $region86: #{fcae_forward.1} parent=71 // pred_check_branch
          %530 = sbr.rel (%p528) target = $region88
        $region87: #{fcae_forward.1} parent=71 // pred_region
          %531 = dma.done [#allocation9], 1024
        $region88: #{fcae_forward.1} parent=71 // pred_fallthru
          _
        // Predicated region
        $region89: #{fcae_forward.1} parent=71 // pred_check
          %p532 = pneg %p203
        $region90: #{fcae_forward.1} parent=71 // pred_check_branch
          %534 = sbr.rel (%p532) target = $region92
        $region91: #{fcae_forward.1} parent=71 // pred_region
          %535 = dma.done [#allocation9], 1024
        $region92: #{fcae_forward.1} parent=71 // pred_fallthru
          _
        // Predicated region
        $region93: #{fcae_forward.1} parent=71 // pred_check
          %p536 = pneg %p245
        $region94: #{fcae_forward.1} parent=71 // pred_check_branch
          %538 = sbr.rel (%p536) target = $region96
        $region95: #{fcae_forward.1} parent=71 // pred_region
          %539 = dma.done [#allocation12], 1024
        $region96: #{fcae_forward.1} parent=71 // pred_fallthru
          _
        // Predicated region
        $region97: #{fcae_forward.1} parent=71 // pred_check
          %p540 = pneg %p287
        $region98: #{fcae_forward.1} parent=71 // pred_check_branch
          %542 = sbr.rel (%p540) target = $region100
        $region99: #{fcae_forward.1} parent=71 // pred_region
          %543 = dma.done [#allocation12], 2048
        $region100: #{fcae_forward.1} parent=71 // pred_fallthru
          _
        %s544 = sand.u32 %s43, 1
        %s545 = scalar_lea.sflag [#allocation3], %s544
        %s546 = sand.u32 %s43, 1
        %s547 = smul.addr %s546, 208
        %s548 = scalar_lea.vmem [#allocation2], %s547
        %p549 = pneg %p56
        %p550 = pneg %p53
        %p551 = pneg %p77
        %p552 = pneg %p74
        %p553 = pneg %p98
        %p554 = pneg %p95
        %p555 = pneg %p119
        %p556 = pneg %p116
        %p557 = pneg %p140
        %p558 = pneg %p137
        %p559 = pneg %p161
        %p560 = pneg %p158
        %p561 = pneg %p182
        %p562 = pneg %p179
        %p563 = pneg %p203
        %p564 = pneg %p200
        %p565 = pneg %p224
        %p566 = pneg %p221
        %p567 = pneg %p245
        %p568 = pneg %p242
        %p569 = pneg %p266
        %p570 = pneg %p263
        %p571 = pneg %p287
        %p572 = pneg %p284
        %p573 = pneg %p308
        %p574 = pneg %p305
        %p575 = pneg %p334
        %p576 = pneg %p331
        %s577 = sand.u32 %s321, 1
        %s578 = scalar_lea.sflag [#allocation4], %s577
        %s579 = sand.u32 %s321, 1
        %s580 = smul.addr %s579, 104
        %s581 = scalar_lea.vmem [#allocation14], %s580
        %p582 = pneg %p360
        %p583 = pneg %p357
        %s584 = sand.u32 %s347, 1
        %s585 = sand.u32 %s347, 1
        %s586 = smul.addr %s585, 104
        %s587 = scalar_lea.vmem [#allocation15], %s586
        %s588 = smul.u32 13, %s35
        %s589 = ssub.s32 25, %s588
        %p590 = scmp.lt.s32.totalorder %s589, 13
        %s591 = scalar_select %p590, %s589, 13
        %s592 = smul.u32 128, %s591
        %s593 = smul.u32 %s592, 2
        %s594 = smul.u32 13, %s35
        %s595 = ssub.s32 25, %s594
        %p596 = scmp.lt.s32.totalorder %s595, 13
        %s597 = scalar_select %p596, %s595, 13
        %s598 = smul.u32 64, %s597
        %s599 = smul.u32 %s598, 2
        %s600 = smul.u32 13, %s35
        %s601 = ssub.s32 25, %s600
        %p602 = scmp.lt.s32.totalorder %s601, 13
        %s603 = scalar_select %p602, %s601, 13
        %s604 = smul.u32 128, %s603
        %v606 = vld [vmem:[%s515] sm:$0xff]
        %v607 = vld [vmem:[%s515 + $0x8] sm:$0xff]
        %v608 = vld [vmem:[%s515 + $0x10] sm:$0xff]
        %v609 = vld [vmem:[%s515 + $0x18] sm:$0xff]
        %v610 = vld [vmem:[%s515 + $0x20] sm:$0xff]
        %v611 = vld [vmem:[%s515 + $0x28] sm:$0xff]
        %v612 = vld [vmem:[%s515 + $0x30] sm:$0xff]
        %v613 = vld [vmem:[%s515 + $0x38] sm:$0xff]
        %v614 = vld [vmem:[%s515 + $0x40] sm:$0xff]
        %v615 = vld [vmem:[%s515 + $0x48] sm:$0xff]
        %v616 = vld [vmem:[%s515 + $0x50] sm:$0xff]
        %v617 = vld [vmem:[%s515 + $0x58] sm:$0xff]
        %v618 = vld [vmem:[%s515 + $0x60] sm:$0xff]
        %v619 = vld [vmem:[%s515 + $0x68] sm:$0xff]
        %v620 = vld [vmem:[%s515 + $0x70] sm:$0xff]
        %v621 = vld [vmem:[%s515 + $0x78] sm:$0xff]
        %v622 = vld [vmem:[%s515 + $0x80] sm:$0xff]
        %v623 = vld [vmem:[%s515 + $0x88] sm:$0xff]
        %v624 = vld [vmem:[%s515 + $0x90] sm:$0xff]
        %v625 = vld [vmem:[%s515 + $0x98] sm:$0xff]
        %v626 = vld [vmem:[%s515 + $0xa0] sm:$0xff]
        %v627 = vld [vmem:[%s515 + $0xa8] sm:$0xff]
        %v628 = vld [vmem:[%s515 + $0xb0] sm:$0xff]
        %v629 = vld [vmem:[%s515 + $0xb8] sm:$0xff]
        %v630 = vld [vmem:[%s515 + $0xc0] sm:$0xff]
        %v631 = vld [vmem:[%s515 + $0xc8] sm:$0xff]
        %v632 = vpack.c.bf16 %v608, %v606
        %v633 = vpack.c.bf16 %v609, %v607
        %v634 = vpack.c.bf16 %v612, %v610
        %v635 = vpack.c.bf16 %v613, %v611
        %v636 = vpack.c.bf16 %v616, %v614
        %v637 = vpack.c.bf16 %v617, %v615
        %v638 = vpack.c.bf16 %v620, %v618
        %v639 = vpack.c.bf16 %v621, %v619
        %v640 = vpack.c.bf16 %v624, %v622
        %v641 = vpack.c.bf16 %v625, %v623
        %v642 = vpack.c.bf16 %v628, %v626
        %v643 = vpack.c.bf16 %v629, %v627
        %v644 = vpack.c.bf16 %v630, %v630
        %v645 = vpack.c.bf16 %v631, %v631
        %v646 = vld [vmem:[#allocation5] sm:$0xf]
        %v647 = vld [vmem:[#allocation5 + $0x4] sm:$0xf]
        %v648 = vld [vmem:[#allocation5 + $0x8] sm:$0xf]
        %v649 = vld [vmem:[#allocation5 + $0xc] sm:$0xf]
        %v650 = vld [vmem:[#allocation5 + $0x10] sm:$0xf]
        %v651 = vld [vmem:[#allocation5 + $0x14] sm:$0xf]
        %v652 = vld [vmem:[#allocation5 + $0x18] sm:$0xf]
        %v653 = vld [vmem:[#allocation5 + $0x1c] sm:$0xf]
        %v654 = vld [vmem:[#allocation5 + $0x20] sm:$0xf]
        %v655 = vld [vmem:[#allocation5 + $0x24] sm:$0xf]
        %v656 = vld [vmem:[#allocation5 + $0x28] sm:$0xf]
        %v657 = vld [vmem:[#allocation5 + $0x2c] sm:$0xf]
        %v658 = vld [vmem:[#allocation5 + $0x30] sm:$0xf]
        %v659 = vld [vmem:[#allocation5 + $0x34] sm:$0xf]
        %v660 = vld [vmem:[#allocation5 + $0x38] sm:$0xf]
        %v661 = vld [vmem:[#allocation5 + $0x3c] sm:$0xf]
        %v662 = vld [vmem:[#allocation5 + $0x40] sm:$0xf]
        %v663 = vld [vmem:[#allocation5 + $0x44] sm:$0xf]
        %v664 = vld [vmem:[#allocation5 + $0x48] sm:$0xf]
        %v665 = vld [vmem:[#allocation5 + $0x4c] sm:$0xf]
        %v666 = vld [vmem:[#allocation5 + $0x50] sm:$0xf]
        %v667 = vld [vmem:[#allocation5 + $0x54] sm:$0xf]
        %v668 = vld [vmem:[#allocation5 + $0x58] sm:$0xf]
        %v669 = vld [vmem:[#allocation5 + $0x5c] sm:$0xf]
        %v670 = vld [vmem:[#allocation5 + $0x60] sm:$0xf]
        %v671 = vld [vmem:[#allocation5 + $0x64] sm:$0xf]
        %v672 = vld [vmem:[#allocation5 + $0x68] sm:$0xf]
        %v673 = vld [vmem:[#allocation5 + $0x6c] sm:$0xf]
        %v674 = vld [vmem:[#allocation5 + $0x70] sm:$0xf]
        %v675 = vld [vmem:[#allocation5 + $0x74] sm:$0xf]
        %v676 = vld [vmem:[#allocation5 + $0x78] sm:$0xf]
        %v677 = vld [vmem:[#allocation5 + $0x7c] sm:$0xf]
        %v678 = vld [vmem:[%s2] sm:$0x1]
        %v680 = vlaneseq
        %v681 = vshrl.u32 %v680, 7
        %v682 = vsub.s32 0, %v681
        %v683 = vrot.slane %v678, %v682
        %v717 = vunpack.c.l.b16 %v646
        %v718 = vunpack.c.l.b16 %v647
        %v719 = vunpack.c.l.b16 %v648
        %v720 = vunpack.c.l.b16 %v649
        %v721 = vunpack.c.l.b16 %v650
        %v722 = vunpack.c.l.b16 %v651
        %v723 = vunpack.c.l.b16 %v652
        %v724 = vunpack.c.l.b16 %v653
        %v725 = vunpack.c.l.b16 %v654
        %v726 = vunpack.c.l.b16 %v655
        %v727 = vunpack.c.l.b16 %v656
        %v728 = vunpack.c.l.b16 %v657
        %v729 = vunpack.c.l.b16 %v658
        %v730 = vunpack.c.l.b16 %v659
        %v731 = vunpack.c.l.b16 %v660
        %v732 = vunpack.c.l.b16 %v661
        %v733 = vunpack.c.l.b16 %v662
        %v734 = vunpack.c.l.b16 %v663
        %v735 = vunpack.c.l.b16 %v664
        %v736 = vunpack.c.l.b16 %v665
        %v737 = vunpack.c.l.b16 %v666
        %v738 = vunpack.c.l.b16 %v667
        %v739 = vunpack.c.l.b16 %v668
        %v740 = vunpack.c.l.b16 %v669
        %v741 = vunpack.c.l.b16 %v670
        %v742 = vunpack.c.l.b16 %v671
        %v743 = vunpack.c.l.b16 %v672
        %v744 = vunpack.c.l.b16 %v673
        %v745 = vunpack.c.l.b16 %v674
        %v746 = vunpack.c.l.b16 %v675
        %v747 = vunpack.c.l.b16 %v676
        %v748 = vunpack.c.l.b16 %v677
        %v749 = vpack.c.b16 %v718, %v717
        %v750 = vpack.c.b16 %v720, %v719
        %v751 = vpack.c.b16 %v722, %v721
        %v752 = vpack.c.b16 %v724, %v723
        %v753 = vpack.c.b16 %v726, %v725
        %v754 = vpack.c.b16 %v728, %v727
        %v755 = vpack.c.b16 %v730, %v729
        %v756 = vpack.c.b16 %v732, %v731
        %v757 = vpack.c.b16 %v734, %v733
        %v758 = vpack.c.b16 %v736, %v735
        %v759 = vpack.c.b16 %v738, %v737
        %v760 = vpack.c.b16 %v740, %v739
        %v761 = vpack.c.b16 %v742, %v741
        %v762 = vpack.c.b16 %v744, %v743
        %v763 = vpack.c.b16 %v746, %v745
        %v764 = vpack.c.b16 %v748, %v747
        %781 = vmatprep.subr.bf16.mxu0 0
        %782 = vmatpush1.bf16.msra.mxu0 %v756
        %783 = vmatprep.subr.bf16.mxu0 0
        %784 = vmatpush1.bf16.msra.mxu0 %v755
        %785 = vmatprep.subr.bf16.mxu0 0
        %786 = vmatpush1.bf16.msra.mxu0 %v754
        %787 = vmatprep.subr.bf16.mxu0 0
        %788 = vmatpush1.bf16.msra.mxu0 %v753
        %789 = vmatprep.subr.bf16.mxu0 0
        %790 = vmatpush1.bf16.msra.mxu0 %v752
        %791 = vmatprep.subr.bf16.mxu0 0
        %792 = vmatpush1.bf16.msra.mxu0 %v751
        %793 = vmatprep.subr.bf16.mxu0 0
        %794 = vmatpush1.bf16.msra.mxu0 %v750
        %795 = vmatprep.subr.bf16.mxu0 0
        %796 = vmatpush1.bf16.msra.mxu0 %v749
        %797 = vmatprep.subr.bf16.mxu0 0
        %798 = vmatpush2.bf16.msra.mxu0 %v764
        %799 = vmatprep.subr.bf16.mxu0 0
        %800 = vmatpush2.bf16.msra.mxu0 %v763
        %801 = vmatprep.subr.bf16.mxu0 0
        %802 = vmatpush2.bf16.msra.mxu0 %v762
        %803 = vmatprep.subr.bf16.mxu0 0
        %804 = vmatpush2.bf16.msra.mxu0 %v761
        %805 = vmatprep.subr.bf16.mxu0 0
        %806 = vmatpush2.bf16.msra.mxu0 %v760
        %807 = vmatprep.subr.bf16.mxu0 0
        %808 = vmatpush2.bf16.msra.mxu0 %v759
        %809 = vmatprep.subr.bf16.mxu0 0
        %810 = vmatpush2.bf16.msra.mxu0 %v758
        %811 = vmatprep.subr.bf16.mxu0 0
        %812 = vmatpush2.bf16.msra.mxu0 %v757
        %813 = vmatprep.mubr.bf16.mxu0 %v633
        %814 = vmatmul.mubr.bf16.gmra.mxu0 %v632
        %v815 = vpop.f32.mrf.mxu0
        %v816 = vadd.f32 %v683, %v815
        %v817 = vpop.f32.mrf.mxu0
        %v818 = vpop.f32.mrf.mxu0
        %v819 = vadd.f32 %v683, %v818
        %v820 = vpop.f32.mrf.mxu0
        %821 = vmatprep.mubr.bf16.mxu0 %v635
        %822 = vmatmul.mubr.bf16.gmra.mxu0 %v634
        %v823 = vpop.f32.mrf.mxu0
        %v824 = vadd.f32 %v683, %v823
        %v825 = vpop.f32.mrf.mxu0
        %v826 = vpop.f32.mrf.mxu0
        %v827 = vadd.f32 %v683, %v826
        %v828 = vpop.f32.mrf.mxu0
        %829 = vmatprep.mubr.bf16.mxu0 %v637
        %830 = vmatmul.mubr.bf16.gmra.mxu0 %v636
        %v831 = vpop.f32.mrf.mxu0
        %v832 = vadd.f32 %v683, %v831
        %v833 = vpop.f32.mrf.mxu0
        %v834 = vpop.f32.mrf.mxu0
        %v835 = vadd.f32 %v683, %v834
        %v836 = vpop.f32.mrf.mxu0
        %837 = vmatprep.mubr.bf16.mxu0 %v639
        %838 = vmatmul.mubr.bf16.gmra.mxu0 %v638
        %v839 = vpop.f32.mrf.mxu0
        %v840 = vadd.f32 %v683, %v839
        %v841 = vpop.f32.mrf.mxu0
        %v842 = vpop.f32.mrf.mxu0
        %v843 = vadd.f32 %v683, %v842
        %v844 = vpop.f32.mrf.mxu0
        %845 = vmatprep.mubr.bf16.mxu0 %v641
        %846 = vmatmul.mubr.bf16.gmra.mxu0 %v640
        %v847 = vpop.f32.mrf.mxu0
        %v848 = vadd.f32 %v683, %v847
        %v849 = vpop.f32.mrf.mxu0
        %v850 = vpop.f32.mrf.mxu0
        %v851 = vadd.f32 %v683, %v850
        %v852 = vpop.f32.mrf.mxu0
        %853 = vmatprep.mubr.bf16.mxu0 %v643
        %854 = vmatmul.mubr.bf16.gmra.mxu0 %v642
        %v855 = vpop.f32.mrf.mxu0
        %v856 = vadd.f32 %v683, %v855
        %v857 = vpop.f32.mrf.mxu0
        %v858 = vpop.f32.mrf.mxu0
        %v859 = vadd.f32 %v683, %v858
        %v860 = vpop.f32.mrf.mxu0
        %861 = vmatprep.mubr.bf16.mxu0 %v645
        %862 = vmatmul.mubr.bf16.gmra.mxu0 %v644
        %v863 = vpop.f32.mrf.mxu0
        %v864 = vadd.f32 %v683, %v863
        %v865 = vpop.f32.mrf.mxu0
        %v866 = vpop.f32.mrf.mxu0
        %v867 = vpop.f32.mrf.mxu0
        %868 = vdwg.mxu0
        %v869 = vmul.f32 %v816, 0.2
        %v870 = vmul.f32 %v819, 0.2
        %v871 = vmul.f32 %v824, 0.2
        %v872 = vmul.f32 %v827, 0.2
        %v873 = vmul.f32 %v832, 0.2
        %v874 = vmul.f32 %v835, 0.2
        %v875 = vmul.f32 %v840, 0.2
        %v876 = vmul.f32 %v843, 0.2
        %v877 = vmul.f32 %v848, 0.2
        %v878 = vmul.f32 %v851, 0.2
        %v879 = vmul.f32 %v856, 0.2
        %v880 = vmul.f32 %v859, 0.2
        %v881 = vmul.f32 %v864, 0.2
        %v882 = vmax.f32 %v816, %v869
        %v883 = vmax.f32 %v819, %v870
        %v884 = vmax.f32 %v824, %v871
        %v885 = vmax.f32 %v827, %v872
        %v886 = vmax.f32 %v832, %v873
        %v887 = vmax.f32 %v835, %v874
        %v888 = vmax.f32 %v840, %v875
        %v889 = vmax.f32 %v843, %v876
        %v890 = vmax.f32 %v848, %v877
        %v891 = vmax.f32 %v851, %v878
        %v892 = vmax.f32 %v856, %v879
        %v893 = vmax.f32 %v859, %v880
        %v894 = vmax.f32 %v864, %v881
        %v895 = vpack.c.bf16 %v883, %v882
        %v896 = vpack.c.bf16 %v885, %v884
        %v897 = vpack.c.bf16 %v887, %v886
        %v898 = vpack.c.bf16 %v889, %v888
        %v899 = vpack.c.bf16 %v891, %v890
        %v900 = vpack.c.bf16 %v893, %v892
        %v901 = vpack.c.bf16 %v894, %v894
        %v902 = vld [vmem:[#allocation7] sm:$0xf]
        %v903 = vld [vmem:[#allocation7 + $0x4] sm:$0xf]
        %v904 = vld [vmem:[#allocation7 + $0x8] sm:$0xf]
        %v905 = vld [vmem:[#allocation7 + $0xc] sm:$0xf]
        %v906 = vld [vmem:[#allocation7 + $0x10] sm:$0xf]
        %v907 = vld [vmem:[#allocation7 + $0x14] sm:$0xf]
        %v908 = vld [vmem:[#allocation7 + $0x18] sm:$0xf]
        %v909 = vld [vmem:[#allocation7 + $0x1c] sm:$0xf]
        %v910 = vld [vmem:[#allocation7 + $0x20] sm:$0xf]
        %v911 = vld [vmem:[#allocation7 + $0x24] sm:$0xf]
        %v912 = vld [vmem:[#allocation7 + $0x28] sm:$0xf]
        %v913 = vld [vmem:[#allocation7 + $0x2c] sm:$0xf]
        %v914 = vld [vmem:[#allocation7 + $0x30] sm:$0xf]
        %v915 = vld [vmem:[#allocation7 + $0x34] sm:$0xf]
        %v916 = vld [vmem:[#allocation7 + $0x38] sm:$0xf]
        %v917 = vld [vmem:[#allocation7 + $0x3c] sm:$0xf]
        %v918 = vld [vmem:[%s4] sm:$0x1]
        %v920 = vlaneseq
        %v921 = vshrl.u32 %v920, 7
        %v922 = vsub.s32 0, %v921
        %v923 = vrot.slane %v918, %v922
        %v941 = vunpack.c.l.b16 %v902
        %v942 = vunpack.c.l.b16 %v903
        %v943 = vunpack.c.l.b16 %v904
        %v944 = vunpack.c.l.b16 %v905
        %v945 = vunpack.c.l.b16 %v906
        %v946 = vunpack.c.l.b16 %v907
        %v947 = vunpack.c.l.b16 %v908
        %v948 = vunpack.c.l.b16 %v909
        %v949 = vunpack.c.l.b16 %v910
        %v950 = vunpack.c.l.b16 %v911
        %v951 = vunpack.c.l.b16 %v912
        %v952 = vunpack.c.l.b16 %v913
        %v953 = vunpack.c.l.b16 %v914
        %v954 = vunpack.c.l.b16 %v915
        %v955 = vunpack.c.l.b16 %v916
        %v956 = vunpack.c.l.b16 %v917
        %v957 = vpack.c.b16 %v942, %v941
        %v958 = vpack.c.b16 %v944, %v943
        %v959 = vpack.c.b16 %v946, %v945
        %v960 = vpack.c.b16 %v948, %v947
        %v961 = vpack.c.b16 %v950, %v949
        %v962 = vpack.c.b16 %v952, %v951
        %v963 = vpack.c.b16 %v954, %v953
        %v964 = vpack.c.b16 %v956, %v955
        %973 = vmatprep.subr.bf16.mxu0 0
        %974 = vmatpush1.bf16.msra.mxu0 %v964
        %975 = vmatprep.subr.bf16.mxu0 0
        %976 = vmatpush1.bf16.msra.mxu0 %v963
        %977 = vmatprep.subr.bf16.mxu0 0
        %978 = vmatpush1.bf16.msra.mxu0 %v962
        %979 = vmatprep.subr.bf16.mxu0 0
        %980 = vmatpush1.bf16.msra.mxu0 %v961
        %981 = vmatprep.subr.bf16.mxu0 0
        %982 = vmatpush1.bf16.msra.mxu0 %v960
        %983 = vmatprep.subr.bf16.mxu0 0
        %984 = vmatpush1.bf16.msra.mxu0 %v959
        %985 = vmatprep.subr.bf16.mxu0 0
        %986 = vmatpush1.bf16.msra.mxu0 %v958
        %987 = vmatprep.subr.bf16.mxu0 0
        %988 = vmatpush1.bf16.msra.mxu0 %v957
        %989 = vmatprep.subr.bf16.mxu0 0
        %990 = vmatpush2.bf16.msra.mxu0 0
        %991 = vmatprep.subr.bf16.mxu0 0
        %992 = vmatpush2.bf16.msra.mxu0 0
        %993 = vmatprep.subr.bf16.mxu0 0
        %994 = vmatpush2.bf16.msra.mxu0 0
        %995 = vmatprep.subr.bf16.mxu0 0
        %996 = vmatpush2.bf16.msra.mxu0 0
        %997 = vmatprep.subr.bf16.mxu0 0
        %998 = vmatpush2.bf16.msra.mxu0 0
        %999 = vmatprep.subr.bf16.mxu0 0
        %1000 = vmatpush2.bf16.msra.mxu0 0
        %1001 = vmatprep.subr.bf16.mxu0 0
        %1002 = vmatpush2.bf16.msra.mxu0 0
        %1003 = vmatprep.subr.bf16.mxu0 0
        %1004 = vmatpush2.bf16.msra.mxu0 0
        %1005 = vmatprep.mubr.bf16.mxu0 0
        %1006 = vmatmul.mubr.bf16.gmra.mxu0 %v895
        %v1007 = vpop.f32.mrf.mxu0
        %v1008 = vadd.f32 %v923, %v1007
        %v1009 = vpop.f32.mrf.mxu0
        %v1010 = vpop.f32.mrf.mxu0
        %v1011 = vadd.f32 %v923, %v1010
        %v1012 = vpop.f32.mrf.mxu0
        %1013 = vmatprep.mubr.bf16.mxu0 0
        %1014 = vmatmul.mubr.bf16.gmra.mxu0 %v896
        %v1015 = vpop.f32.mrf.mxu0
        %v1016 = vadd.f32 %v923, %v1015
        %v1017 = vpop.f32.mrf.mxu0
        %v1018 = vpop.f32.mrf.mxu0
        %v1019 = vadd.f32 %v923, %v1018
        %v1020 = vpop.f32.mrf.mxu0
        %1021 = vmatprep.mubr.bf16.mxu0 0
        %1022 = vmatmul.mubr.bf16.gmra.mxu0 %v897
        %v1023 = vpop.f32.mrf.mxu0
        %v1024 = vadd.f32 %v923, %v1023
        %v1025 = vpop.f32.mrf.mxu0
        %v1026 = vpop.f32.mrf.mxu0
        %v1027 = vadd.f32 %v923, %v1026
        %v1028 = vpop.f32.mrf.mxu0
        %1029 = vmatprep.mubr.bf16.mxu0 0
        %1030 = vmatmul.mubr.bf16.gmra.mxu0 %v898
        %v1031 = vpop.f32.mrf.mxu0
        %v1032 = vadd.f32 %v923, %v1031
        %v1033 = vpop.f32.mrf.mxu0
        %v1034 = vpop.f32.mrf.mxu0
        %v1035 = vadd.f32 %v923, %v1034
        %v1036 = vpop.f32.mrf.mxu0
        %1037 = vmatprep.mubr.bf16.mxu0 0
        %1038 = vmatmul.mubr.bf16.gmra.mxu0 %v899
        %v1039 = vpop.f32.mrf.mxu0
        %v1040 = vadd.f32 %v923, %v1039
        %v1041 = vpop.f32.mrf.mxu0
        %v1042 = vpop.f32.mrf.mxu0
        %v1043 = vadd.f32 %v923, %v1042
        %v1044 = vpop.f32.mrf.mxu0
        %1045 = vmatprep.mubr.bf16.mxu0 0
        %1046 = vmatmul.mubr.bf16.gmra.mxu0 %v900
        %v1047 = vpop.f32.mrf.mxu0
        %v1048 = vadd.f32 %v923, %v1047
        %v1049 = vpop.f32.mrf.mxu0
        %v1050 = vpop.f32.mrf.mxu0
        %v1051 = vadd.f32 %v923, %v1050
        %v1052 = vpop.f32.mrf.mxu0
        %1053 = vmatprep.mubr.bf16.mxu0 0
        %1054 = vmatmul.mubr.bf16.gmra.mxu0 %v901
        %v1055 = vpop.f32.mrf.mxu0
        %v1056 = vadd.f32 %v923, %v1055
        %v1057 = vpop.f32.mrf.mxu0
        %v1058 = vpop.f32.mrf.mxu0
        %v1059 = vpop.f32.mrf.mxu0
        %1060 = vdwg.mxu0
        %v1061 = vmul.f32 %v1008, 0.2
        %v1062 = vmul.f32 %v1011, 0.2
        %v1063 = vmul.f32 %v1016, 0.2
        %v1064 = vmul.f32 %v1019, 0.2
        %v1065 = vmul.f32 %v1024, 0.2
        %v1066 = vmul.f32 %v1027, 0.2
        %v1067 = vmul.f32 %v1032, 0.2
        %v1068 = vmul.f32 %v1035, 0.2
        %v1069 = vmul.f32 %v1040, 0.2
        %v1070 = vmul.f32 %v1043, 0.2
        %v1071 = vmul.f32 %v1048, 0.2
        %v1072 = vmul.f32 %v1051, 0.2
        %v1073 = vmul.f32 %v1056, 0.2
        %v1074 = vmax.f32 %v1008, %v1061
        %v1075 = vmax.f32 %v1011, %v1062
        %v1076 = vmax.f32 %v1016, %v1063
        %v1077 = vmax.f32 %v1019, %v1064
        %v1078 = vmax.f32 %v1024, %v1065
        %v1079 = vmax.f32 %v1027, %v1066
        %v1080 = vmax.f32 %v1032, %v1067
        %v1081 = vmax.f32 %v1035, %v1068
        %v1082 = vmax.f32 %v1040, %v1069
        %v1083 = vmax.f32 %v1043, %v1070
        %v1084 = vmax.f32 %v1048, %v1071
        %v1085 = vmax.f32 %v1051, %v1072
        %v1086 = vmax.f32 %v1056, %v1073
        %v1087 = vpack.c.bf16 %v1075, %v1074
        %v1088 = vpack.c.bf16 %v1077, %v1076
        %v1089 = vpack.c.bf16 %v1079, %v1078
        %v1090 = vpack.c.bf16 %v1081, %v1080
        %v1091 = vpack.c.bf16 %v1083, %v1082
        %v1092 = vpack.c.bf16 %v1085, %v1084
        %v1093 = vpack.c.bf16 %v1086, %v1086
        %v1094 = vld [vmem:[#allocation8] sm:$0xf]
        %v1095 = vld [vmem:[#allocation8 + $0x4] sm:$0xf]
        %v1096 = vld [vmem:[#allocation8 + $0x8] sm:$0xf]
        %v1097 = vld [vmem:[#allocation8 + $0xc] sm:$0xf]
        %v1098 = vld [vmem:[#allocation8 + $0x10] sm:$0xf]
        %v1099 = vld [vmem:[#allocation8 + $0x14] sm:$0xf]
        %v1100 = vld [vmem:[#allocation8 + $0x18] sm:$0xf]
        %v1101 = vld [vmem:[#allocation8 + $0x1c] sm:$0xf]
        %v1102 = vld [vmem:[#allocation8 + $0x20] sm:$0xf]
        %v1103 = vld [vmem:[#allocation8 + $0x24] sm:$0xf]
        %v1104 = vld [vmem:[#allocation8 + $0x28] sm:$0xf]
        %v1105 = vld [vmem:[#allocation8 + $0x2c] sm:$0xf]
        %v1106 = vld [vmem:[#allocation8 + $0x30] sm:$0xf]
        %v1107 = vld [vmem:[#allocation8 + $0x34] sm:$0xf]
        %v1108 = vld [vmem:[#allocation8 + $0x38] sm:$0xf]
        %v1109 = vld [vmem:[#allocation8 + $0x3c] sm:$0xf]
        %v1110 = vld [vmem:[%s6] sm:$0x1]
        %v1112 = vlaneseq
        %v1113 = vshrl.u32 %v1112, 7
        %v1114 = vsub.s32 0, %v1113
        %v1115 = vrot.slane %v1110, %v1114
        %v1133 = vunpack.c.l.b16 %v1094
        %v1134 = vunpack.c.l.b16 %v1095
        %v1135 = vunpack.c.l.b16 %v1096
        %v1136 = vunpack.c.l.b16 %v1097
        %v1137 = vunpack.c.l.b16 %v1098
        %v1138 = vunpack.c.l.b16 %v1099
        %v1139 = vunpack.c.l.b16 %v1100
        %v1140 = vunpack.c.l.b16 %v1101
        %v1141 = vunpack.c.l.b16 %v1102
        %v1142 = vunpack.c.l.b16 %v1103
        %v1143 = vunpack.c.l.b16 %v1104
        %v1144 = vunpack.c.l.b16 %v1105
        %v1145 = vunpack.c.l.b16 %v1106
        %v1146 = vunpack.c.l.b16 %v1107
        %v1147 = vunpack.c.l.b16 %v1108
        %v1148 = vunpack.c.l.b16 %v1109
        %v1149 = vpack.c.b16 %v1134, %v1133
        %v1150 = vpack.c.b16 %v1136, %v1135
        %v1151 = vpack.c.b16 %v1138, %v1137
        %v1152 = vpack.c.b16 %v1140, %v1139
        %v1153 = vpack.c.b16 %v1142, %v1141
        %v1154 = vpack.c.b16 %v1144, %v1143
        %v1155 = vpack.c.b16 %v1146, %v1145
        %v1156 = vpack.c.b16 %v1148, %v1147
        %1165 = vmatprep.subr.bf16.mxu0 0
        %1166 = vmatpush1.bf16.msra.mxu0 %v1156
        %1167 = vmatprep.subr.bf16.mxu0 0
        %1168 = vmatpush1.bf16.msra.mxu0 %v1155
        %1169 = vmatprep.subr.bf16.mxu0 0
        %1170 = vmatpush1.bf16.msra.mxu0 %v1154
        %1171 = vmatprep.subr.bf16.mxu0 0
        %1172 = vmatpush1.bf16.msra.mxu0 %v1153
        %1173 = vmatprep.subr.bf16.mxu0 0
        %1174 = vmatpush1.bf16.msra.mxu0 %v1152
        %1175 = vmatprep.subr.bf16.mxu0 0
        %1176 = vmatpush1.bf16.msra.mxu0 %v1151
        %1177 = vmatprep.subr.bf16.mxu0 0
        %1178 = vmatpush1.bf16.msra.mxu0 %v1150
        %1179 = vmatprep.subr.bf16.mxu0 0
        %1180 = vmatpush1.bf16.msra.mxu0 %v1149
        %1181 = vmatprep.subr.bf16.mxu0 0
        %1182 = vmatpush2.bf16.msra.mxu0 0
        %1183 = vmatprep.subr.bf16.mxu0 0
        %1184 = vmatpush2.bf16.msra.mxu0 0
        %1185 = vmatprep.subr.bf16.mxu0 0
        %1186 = vmatpush2.bf16.msra.mxu0 0
        %1187 = vmatprep.subr.bf16.mxu0 0
        %1188 = vmatpush2.bf16.msra.mxu0 0
        %1189 = vmatprep.subr.bf16.mxu0 0
        %1190 = vmatpush2.bf16.msra.mxu0 0
        %1191 = vmatprep.subr.bf16.mxu0 0
        %1192 = vmatpush2.bf16.msra.mxu0 0
        %1193 = vmatprep.subr.bf16.mxu0 0
        %1194 = vmatpush2.bf16.msra.mxu0 0
        %1195 = vmatprep.subr.bf16.mxu0 0
        %1196 = vmatpush2.bf16.msra.mxu0 0
        %1197 = vmatprep.mubr.bf16.mxu0 0
        %1198 = vmatmul.mubr.bf16.gmra.mxu0 %v1087
        %v1199 = vpop.f32.mrf.mxu0
        %v1200 = vadd.f32 %v1115, %v1199
        %v1201 = vpop.f32.mrf.mxu0
        %v1202 = vpop.f32.mrf.mxu0
        %v1203 = vadd.f32 %v1115, %v1202
        %v1204 = vpop.f32.mrf.mxu0
        %1205 = vmatprep.mubr.bf16.mxu0 0
        %1206 = vmatmul.mubr.bf16.gmra.mxu0 %v1088
        %v1207 = vpop.f32.mrf.mxu0
        %v1208 = vadd.f32 %v1115, %v1207
        %v1209 = vpop.f32.mrf.mxu0
        %v1210 = vpop.f32.mrf.mxu0
        %v1211 = vadd.f32 %v1115, %v1210
        %v1212 = vpop.f32.mrf.mxu0
        %1213 = vmatprep.mubr.bf16.mxu0 0
        %1214 = vmatmul.mubr.bf16.gmra.mxu0 %v1089
        %v1215 = vpop.f32.mrf.mxu0
        %v1216 = vadd.f32 %v1115, %v1215
        %v1217 = vpop.f32.mrf.mxu0
        %v1218 = vpop.f32.mrf.mxu0
        %v1219 = vadd.f32 %v1115, %v1218
        %v1220 = vpop.f32.mrf.mxu0
        %1221 = vmatprep.mubr.bf16.mxu0 0
        %1222 = vmatmul.mubr.bf16.gmra.mxu0 %v1090
        %v1223 = vpop.f32.mrf.mxu0
        %v1224 = vadd.f32 %v1115, %v1223
        %v1225 = vpop.f32.mrf.mxu0
        %v1226 = vpop.f32.mrf.mxu0
        %v1227 = vadd.f32 %v1115, %v1226
        %v1228 = vpop.f32.mrf.mxu0
        %1229 = vmatprep.mubr.bf16.mxu0 0
        %1230 = vmatmul.mubr.bf16.gmra.mxu0 %v1091
        %v1231 = vpop.f32.mrf.mxu0
        %v1232 = vadd.f32 %v1115, %v1231
        %v1233 = vpop.f32.mrf.mxu0
        %v1234 = vpop.f32.mrf.mxu0
        %v1235 = vadd.f32 %v1115, %v1234
        %v1236 = vpop.f32.mrf.mxu0
        %1237 = vmatprep.mubr.bf16.mxu0 0
        %1238 = vmatmul.mubr.bf16.gmra.mxu0 %v1092
        %v1239 = vpop.f32.mrf.mxu0
        %v1240 = vadd.f32 %v1115, %v1239
        %v1241 = vpop.f32.mrf.mxu0
        %v1242 = vpop.f32.mrf.mxu0
        %v1243 = vadd.f32 %v1115, %v1242
        %v1244 = vpop.f32.mrf.mxu0
        %1245 = vmatprep.mubr.bf16.mxu0 0
        %1246 = vmatmul.mubr.bf16.gmra.mxu0 %v1093
        %v1247 = vpop.f32.mrf.mxu0
        %v1248 = vadd.f32 %v1115, %v1247
        %v1249 = vpop.f32.mrf.mxu0
        %v1250 = vpop.f32.mrf.mxu0
        %v1251 = vpop.f32.mrf.mxu0
        %1252 = vdwg.mxu0
        %v1253 = vmul.f32 %v1200, 0.2
        %v1254 = vmul.f32 %v1203, 0.2
        %v1255 = vmul.f32 %v1208, 0.2
        %v1256 = vmul.f32 %v1211, 0.2
        %v1257 = vmul.f32 %v1216, 0.2
        %v1258 = vmul.f32 %v1219, 0.2
        %v1259 = vmul.f32 %v1224, 0.2
        %v1260 = vmul.f32 %v1227, 0.2
        %v1261 = vmul.f32 %v1232, 0.2
        %v1262 = vmul.f32 %v1235, 0.2
        %v1263 = vmul.f32 %v1240, 0.2
        %v1264 = vmul.f32 %v1243, 0.2
        %v1265 = vmul.f32 %v1248, 0.2
        %v1266 = vmax.f32 %v1200, %v1253
        %v1267 = vmax.f32 %v1203, %v1254
        %v1268 = vmax.f32 %v1208, %v1255
        %v1269 = vmax.f32 %v1211, %v1256
        %v1270 = vmax.f32 %v1216, %v1257
        %v1271 = vmax.f32 %v1219, %v1258
        %v1272 = vmax.f32 %v1224, %v1259
        %v1273 = vmax.f32 %v1227, %v1260
        %v1274 = vmax.f32 %v1232, %v1261
        %v1275 = vmax.f32 %v1235, %v1262
        %v1276 = vmax.f32 %v1240, %v1263
        %v1277 = vmax.f32 %v1243, %v1264
        %v1278 = vmax.f32 %v1248, %v1265
        %vm1279 = vcmask 130048
        %1280 = vst.msk [vmem:[%s587] sm:$0xff] %vm1279, %v1266
        %1281 = vst.msk [vmem:[%s587 + $0x8] sm:$0xff] %vm1279, %v1267
        %1282 = vst.msk [vmem:[%s587 + $0x10] sm:$0xff] %vm1279, %v1268
        %1283 = vst.msk [vmem:[%s587 + $0x18] sm:$0xff] %vm1279, %v1269
        %1284 = vst.msk [vmem:[%s587 + $0x20] sm:$0xff] %vm1279, %v1270
        %1285 = vst.msk [vmem:[%s587 + $0x28] sm:$0xff] %vm1279, %v1271
        %1286 = vst.msk [vmem:[%s587 + $0x30] sm:$0xff] %vm1279, %v1272
        %1287 = vst.msk [vmem:[%s587 + $0x38] sm:$0xff] %vm1279, %v1273
        %1288 = vst.msk [vmem:[%s587 + $0x40] sm:$0xff] %vm1279, %v1274
        %1289 = vst.msk [vmem:[%s587 + $0x48] sm:$0xff] %vm1279, %v1275
        %1290 = vst.msk [vmem:[%s587 + $0x50] sm:$0xff] %vm1279, %v1276
        %1291 = vst.msk [vmem:[%s587 + $0x58] sm:$0xff] %vm1279, %v1277
        %1292 = vst.msk [vmem:[%s587 + $0x60] sm:$0xff] %vm1279, %v1278
        %v1293 = vpack.c.bf16 %v1267, %v1266
        %v1294 = vpack.c.bf16 %v1269, %v1268
        %v1295 = vpack.c.bf16 %v1271, %v1270
        %v1296 = vpack.c.bf16 %v1273, %v1272
        %v1297 = vpack.c.bf16 %v1275, %v1274
        %v1298 = vpack.c.bf16 %v1277, %v1276
        %v1299 = vpack.c.bf16 %v1278, %v1278
        %v1300 = vld [vmem:[#allocation10] sm:$0xf]
        %v1301 = vld [vmem:[#allocation10 + $0x4] sm:$0xf]
        %v1302 = vld [vmem:[#allocation10 + $0x8] sm:$0xf]
        %v1303 = vld [vmem:[#allocation10 + $0xc] sm:$0xf]
        %v1304 = vld [vmem:[#allocation10 + $0x10] sm:$0xf]
        %v1305 = vld [vmem:[#allocation10 + $0x14] sm:$0xf]
        %v1306 = vld [vmem:[#allocation10 + $0x18] sm:$0xf]
        %v1307 = vld [vmem:[#allocation10 + $0x1c] sm:$0xf]
        %v1308 = vld [vmem:[#allocation10 + $0x20] sm:$0xf]
        %v1309 = vld [vmem:[#allocation10 + $0x24] sm:$0xf]
        %v1310 = vld [vmem:[#allocation10 + $0x28] sm:$0xf]
        %v1311 = vld [vmem:[#allocation10 + $0x2c] sm:$0xf]
        %v1312 = vld [vmem:[#allocation10 + $0x30] sm:$0xf]
        %v1313 = vld [vmem:[#allocation10 + $0x34] sm:$0xf]
        %v1314 = vld [vmem:[#allocation10 + $0x38] sm:$0xf]
        %v1315 = vld [vmem:[#allocation10 + $0x3c] sm:$0xf]
        %v1316 = vld [vmem:[%s8] sm:$0x1]
        %v1318 = vlaneseq
        %v1319 = vshrl.u32 %v1318, 7
        %v1320 = vsub.s32 0, %v1319
        %v1321 = vrot.slane %v1316, %v1320
        %v1339 = vunpack.c.l.b16 %v1300
        %v1340 = vunpack.c.l.b16 %v1301
        %v1341 = vunpack.c.l.b16 %v1302
        %v1342 = vunpack.c.l.b16 %v1303
        %v1343 = vunpack.c.l.b16 %v1304
        %v1344 = vunpack.c.l.b16 %v1305
        %v1345 = vunpack.c.l.b16 %v1306
        %v1346 = vunpack.c.l.b16 %v1307
        %v1347 = vunpack.c.l.b16 %v1308
        %v1348 = vunpack.c.l.b16 %v1309
        %v1349 = vunpack.c.l.b16 %v1310
        %v1350 = vunpack.c.l.b16 %v1311
        %v1351 = vunpack.c.l.b16 %v1312
        %v1352 = vunpack.c.l.b16 %v1313
        %v1353 = vunpack.c.l.b16 %v1314
        %v1354 = vunpack.c.l.b16 %v1315
        %v1355 = vpack.c.b16 %v1340, %v1339
        %v1356 = vpack.c.b16 %v1342, %v1341
        %v1357 = vpack.c.b16 %v1344, %v1343
        %v1358 = vpack.c.b16 %v1346, %v1345
        %v1359 = vpack.c.b16 %v1348, %v1347
        %v1360 = vpack.c.b16 %v1350, %v1349
        %v1361 = vpack.c.b16 %v1352, %v1351
        %v1362 = vpack.c.b16 %v1354, %v1353
        %1371 = vmatprep.subr.bf16.mxu0 0
        %1372 = vmatpush1.bf16.msra.mxu0 %v1362
        %1373 = vmatprep.subr.bf16.mxu0 0
        %1374 = vmatpush1.bf16.msra.mxu0 %v1361
        %1375 = vmatprep.subr.bf16.mxu0 0
        %1376 = vmatpush1.bf16.msra.mxu0 %v1360
        %1377 = vmatprep.subr.bf16.mxu0 0
        %1378 = vmatpush1.bf16.msra.mxu0 %v1359
        %1379 = vmatprep.subr.bf16.mxu0 0
        %1380 = vmatpush1.bf16.msra.mxu0 %v1358
        %1381 = vmatprep.subr.bf16.mxu0 0
        %1382 = vmatpush1.bf16.msra.mxu0 %v1357
        %1383 = vmatprep.subr.bf16.mxu0 0
        %1384 = vmatpush1.bf16.msra.mxu0 %v1356
        %1385 = vmatprep.subr.bf16.mxu0 0
        %1386 = vmatpush1.bf16.msra.mxu0 %v1355
        %1387 = vmatprep.subr.bf16.mxu0 0
        %1388 = vmatpush2.bf16.msra.mxu0 0
        %1389 = vmatprep.subr.bf16.mxu0 0
        %1390 = vmatpush2.bf16.msra.mxu0 0
        %1391 = vmatprep.subr.bf16.mxu0 0
        %1392 = vmatpush2.bf16.msra.mxu0 0
        %1393 = vmatprep.subr.bf16.mxu0 0
        %1394 = vmatpush2.bf16.msra.mxu0 0
        %1395 = vmatprep.subr.bf16.mxu0 0
        %1396 = vmatpush2.bf16.msra.mxu0 0
        %1397 = vmatprep.subr.bf16.mxu0 0
        %1398 = vmatpush2.bf16.msra.mxu0 0
        %1399 = vmatprep.subr.bf16.mxu0 0
        %1400 = vmatpush2.bf16.msra.mxu0 0
        %1401 = vmatprep.subr.bf16.mxu0 0
        %1402 = vmatpush2.bf16.msra.mxu0 0
        %1403 = vmatprep.mubr.bf16.mxu0 0
        %1404 = vmatmul.mubr.bf16.gmra.mxu0 %v1293
        %v1405 = vpop.f32.mrf.mxu0
        %v1406 = vadd.f32 %v1321, %v1405
        %v1407 = vpop.f32.mrf.mxu0
        %v1408 = vpop.f32.mrf.mxu0
        %v1409 = vadd.f32 %v1321, %v1408
        %v1410 = vpop.f32.mrf.mxu0
        %1411 = vmatprep.mubr.bf16.mxu0 0
        %1412 = vmatmul.mubr.bf16.gmra.mxu0 %v1294
        %v1413 = vpop.f32.mrf.mxu0
        %v1414 = vadd.f32 %v1321, %v1413
        %v1415 = vpop.f32.mrf.mxu0
        %v1416 = vpop.f32.mrf.mxu0
        %v1417 = vadd.f32 %v1321, %v1416
        %v1418 = vpop.f32.mrf.mxu0
        %1419 = vmatprep.mubr.bf16.mxu0 0
        %1420 = vmatmul.mubr.bf16.gmra.mxu0 %v1295
        %v1421 = vpop.f32.mrf.mxu0
        %v1422 = vadd.f32 %v1321, %v1421
        %v1423 = vpop.f32.mrf.mxu0
        %v1424 = vpop.f32.mrf.mxu0
        %v1425 = vadd.f32 %v1321, %v1424
        %v1426 = vpop.f32.mrf.mxu0
        %1427 = vmatprep.mubr.bf16.mxu0 0
        %1428 = vmatmul.mubr.bf16.gmra.mxu0 %v1296
        %v1429 = vpop.f32.mrf.mxu0
        %v1430 = vadd.f32 %v1321, %v1429
        %v1431 = vpop.f32.mrf.mxu0
        %v1432 = vpop.f32.mrf.mxu0
        %v1433 = vadd.f32 %v1321, %v1432
        %v1434 = vpop.f32.mrf.mxu0
        %1435 = vmatprep.mubr.bf16.mxu0 0
        %1436 = vmatmul.mubr.bf16.gmra.mxu0 %v1297
        %v1437 = vpop.f32.mrf.mxu0
        %v1438 = vadd.f32 %v1321, %v1437
        %v1439 = vpop.f32.mrf.mxu0
        %v1440 = vpop.f32.mrf.mxu0
        %v1441 = vadd.f32 %v1321, %v1440
        %v1442 = vpop.f32.mrf.mxu0
        %1443 = vmatprep.mubr.bf16.mxu0 0
        %1444 = vmatmul.mubr.bf16.gmra.mxu0 %v1298
        %v1445 = vpop.f32.mrf.mxu0
        %v1446 = vadd.f32 %v1321, %v1445
        %v1447 = vpop.f32.mrf.mxu0
        %v1448 = vpop.f32.mrf.mxu0
        %v1449 = vadd.f32 %v1321, %v1448
        %v1450 = vpop.f32.mrf.mxu0
        %1451 = vmatprep.mubr.bf16.mxu0 0
        %1452 = vmatmul.mubr.bf16.gmra.mxu0 %v1299
        %v1453 = vpop.f32.mrf.mxu0
        %v1454 = vadd.f32 %v1321, %v1453
        %v1455 = vpop.f32.mrf.mxu0
        %v1456 = vpop.f32.mrf.mxu0
        %v1457 = vpop.f32.mrf.mxu0
        %1458 = vdwg.mxu0
        %v1459 = vmul.f32 %v1406, 0.2
        %v1460 = vmul.f32 %v1409, 0.2
        %v1461 = vmul.f32 %v1414, 0.2
        %v1462 = vmul.f32 %v1417, 0.2
        %v1463 = vmul.f32 %v1422, 0.2
        %v1464 = vmul.f32 %v1425, 0.2
        %v1465 = vmul.f32 %v1430, 0.2
        %v1466 = vmul.f32 %v1433, 0.2
        %v1467 = vmul.f32 %v1438, 0.2
        %v1468 = vmul.f32 %v1441, 0.2
        %v1469 = vmul.f32 %v1446, 0.2
        %v1470 = vmul.f32 %v1449, 0.2
        %v1471 = vmul.f32 %v1454, 0.2
        %v1472 = vmax.f32 %v1406, %v1459
        %v1473 = vmax.f32 %v1409, %v1460
        %v1474 = vmax.f32 %v1414, %v1461
        %v1475 = vmax.f32 %v1417, %v1462
        %v1476 = vmax.f32 %v1422, %v1463
        %v1477 = vmax.f32 %v1425, %v1464
        %v1478 = vmax.f32 %v1430, %v1465
        %v1479 = vmax.f32 %v1433, %v1466
        %v1480 = vmax.f32 %v1438, %v1467
        %v1481 = vmax.f32 %v1441, %v1468
        %v1482 = vmax.f32 %v1446, %v1469
        %v1483 = vmax.f32 %v1449, %v1470
        %v1484 = vmax.f32 %v1454, %v1471
        %v1485 = vpack.c.bf16 %v1473, %v1472
        %v1486 = vpack.c.bf16 %v1475, %v1474
        %v1487 = vpack.c.bf16 %v1477, %v1476
        %v1488 = vpack.c.bf16 %v1479, %v1478
        %v1489 = vpack.c.bf16 %v1481, %v1480
        %v1490 = vpack.c.bf16 %v1483, %v1482
        %v1491 = vpack.c.bf16 %v1484, %v1484
        %v1492 = vld [vmem:[#allocation11] sm:$0xf]
        %v1493 = vld [vmem:[#allocation11 + $0x4] sm:$0xf]
        %v1494 = vld [vmem:[#allocation11 + $0x8] sm:$0xf]
        %v1495 = vld [vmem:[#allocation11 + $0xc] sm:$0xf]
        %v1496 = vld [vmem:[#allocation11 + $0x10] sm:$0xf]
        %v1497 = vld [vmem:[#allocation11 + $0x14] sm:$0xf]
        %v1498 = vld [vmem:[#allocation11 + $0x18] sm:$0xf]
        %v1499 = vld [vmem:[#allocation11 + $0x1c] sm:$0xf]
        %v1500 = vld [vmem:[#allocation11 + $0x20] sm:$0xf]
        %v1501 = vld [vmem:[#allocation11 + $0x24] sm:$0xf]
        %v1502 = vld [vmem:[#allocation11 + $0x28] sm:$0xf]
        %v1503 = vld [vmem:[#allocation11 + $0x2c] sm:$0xf]
        %v1504 = vld [vmem:[#allocation11 + $0x30] sm:$0xf]
        %v1505 = vld [vmem:[#allocation11 + $0x34] sm:$0xf]
        %v1506 = vld [vmem:[#allocation11 + $0x38] sm:$0xf]
        %v1507 = vld [vmem:[#allocation11 + $0x3c] sm:$0xf]
        %v1508 = vld [vmem:[%s10] sm:$0x1]
        %v1510 = vlaneseq
        %v1511 = vshrl.u32 %v1510, 7
        %v1512 = vsub.s32 0, %v1511
        %v1513 = vrot.slane %v1508, %v1512
        %v1531 = vunpack.c.l.b16 %v1492
        %v1532 = vunpack.c.l.b16 %v1493
        %v1533 = vunpack.c.l.b16 %v1494
        %v1534 = vunpack.c.l.b16 %v1495
        %v1535 = vunpack.c.l.b16 %v1496
        %v1536 = vunpack.c.l.b16 %v1497
        %v1537 = vunpack.c.l.b16 %v1498
        %v1538 = vunpack.c.l.b16 %v1499
        %v1539 = vunpack.c.l.b16 %v1500
        %v1540 = vunpack.c.l.b16 %v1501
        %v1541 = vunpack.c.l.b16 %v1502
        %v1542 = vunpack.c.l.b16 %v1503
        %v1543 = vunpack.c.l.b16 %v1504
        %v1544 = vunpack.c.l.b16 %v1505
        %v1545 = vunpack.c.l.b16 %v1506
        %v1546 = vunpack.c.l.b16 %v1507
        %v1547 = vpack.c.b16 %v1532, %v1531
        %v1548 = vpack.c.b16 %v1534, %v1533
        %v1549 = vpack.c.b16 %v1536, %v1535
        %v1550 = vpack.c.b16 %v1538, %v1537
        %v1551 = vpack.c.b16 %v1540, %v1539
        %v1552 = vpack.c.b16 %v1542, %v1541
        %v1553 = vpack.c.b16 %v1544, %v1543
        %v1554 = vpack.c.b16 %v1546, %v1545
        %1563 = vmatprep.subr.bf16.mxu0 0
        %1564 = vmatpush1.bf16.msra.mxu0 %v1554
        %1565 = vmatprep.subr.bf16.mxu0 0
        %1566 = vmatpush1.bf16.msra.mxu0 %v1553
        %1567 = vmatprep.subr.bf16.mxu0 0
        %1568 = vmatpush1.bf16.msra.mxu0 %v1552
        %1569 = vmatprep.subr.bf16.mxu0 0
        %1570 = vmatpush1.bf16.msra.mxu0 %v1551
        %1571 = vmatprep.subr.bf16.mxu0 0
        %1572 = vmatpush1.bf16.msra.mxu0 %v1550
        %1573 = vmatprep.subr.bf16.mxu0 0
        %1574 = vmatpush1.bf16.msra.mxu0 %v1549
        %1575 = vmatprep.subr.bf16.mxu0 0
        %1576 = vmatpush1.bf16.msra.mxu0 %v1548
        %1577 = vmatprep.subr.bf16.mxu0 0
        %1578 = vmatpush1.bf16.msra.mxu0 %v1547
        %1579 = vmatprep.subr.bf16.mxu0 0
        %1580 = vmatpush2.bf16.msra.mxu0 0
        %1581 = vmatprep.subr.bf16.mxu0 0
        %1582 = vmatpush2.bf16.msra.mxu0 0
        %1583 = vmatprep.subr.bf16.mxu0 0
        %1584 = vmatpush2.bf16.msra.mxu0 0
        %1585 = vmatprep.subr.bf16.mxu0 0
        %1586 = vmatpush2.bf16.msra.mxu0 0
        %1587 = vmatprep.subr.bf16.mxu0 0
        %1588 = vmatpush2.bf16.msra.mxu0 0
        %1589 = vmatprep.subr.bf16.mxu0 0
        %1590 = vmatpush2.bf16.msra.mxu0 0
        %1591 = vmatprep.subr.bf16.mxu0 0
        %1592 = vmatpush2.bf16.msra.mxu0 0
        %1593 = vmatprep.subr.bf16.mxu0 0
        %1594 = vmatpush2.bf16.msra.mxu0 0
        %1595 = vmatprep.mubr.bf16.mxu0 0
        %1596 = vmatmul.mubr.bf16.gmra.mxu0 %v1485
        %v1597 = vpop.f32.mrf.mxu0
        %v1598 = vadd.f32 %v1513, %v1597
        %v1599 = vpop.f32.mrf.mxu0
        %v1600 = vpop.f32.mrf.mxu0
        %v1601 = vadd.f32 %v1513, %v1600
        %v1602 = vpop.f32.mrf.mxu0
        %1603 = vmatprep.mubr.bf16.mxu0 0
        %1604 = vmatmul.mubr.bf16.gmra.mxu0 %v1486
        %v1605 = vpop.f32.mrf.mxu0
        %v1606 = vadd.f32 %v1513, %v1605
        %v1607 = vpop.f32.mrf.mxu0
        %v1608 = vpop.f32.mrf.mxu0
        %v1609 = vadd.f32 %v1513, %v1608
        %v1610 = vpop.f32.mrf.mxu0
        %1611 = vmatprep.mubr.bf16.mxu0 0
        %1612 = vmatmul.mubr.bf16.gmra.mxu0 %v1487
        %v1613 = vpop.f32.mrf.mxu0
        %v1614 = vadd.f32 %v1513, %v1613
        %v1615 = vpop.f32.mrf.mxu0
        %v1616 = vpop.f32.mrf.mxu0
        %v1617 = vadd.f32 %v1513, %v1616
        %v1618 = vpop.f32.mrf.mxu0
        %1619 = vmatprep.mubr.bf16.mxu0 0
        %1620 = vmatmul.mubr.bf16.gmra.mxu0 %v1488
        %v1621 = vpop.f32.mrf.mxu0
        %v1622 = vadd.f32 %v1513, %v1621
        %v1623 = vpop.f32.mrf.mxu0
        %v1624 = vpop.f32.mrf.mxu0
        %v1625 = vadd.f32 %v1513, %v1624
        %v1626 = vpop.f32.mrf.mxu0
        %1627 = vmatprep.mubr.bf16.mxu0 0
        %1628 = vmatmul.mubr.bf16.gmra.mxu0 %v1489
        %v1629 = vpop.f32.mrf.mxu0
        %v1630 = vadd.f32 %v1513, %v1629
        %v1631 = vpop.f32.mrf.mxu0
        %v1632 = vpop.f32.mrf.mxu0
        %v1633 = vadd.f32 %v1513, %v1632
        %v1634 = vpop.f32.mrf.mxu0
        %1635 = vmatprep.mubr.bf16.mxu0 0
        %1636 = vmatmul.mubr.bf16.gmra.mxu0 %v1490
        %v1637 = vpop.f32.mrf.mxu0
        %v1638 = vadd.f32 %v1513, %v1637
        %v1639 = vpop.f32.mrf.mxu0
        %v1640 = vpop.f32.mrf.mxu0
        %v1641 = vadd.f32 %v1513, %v1640
        %v1642 = vpop.f32.mrf.mxu0
        %1643 = vmatprep.mubr.bf16.mxu0 0
        %1644 = vmatmul.mubr.bf16.gmra.mxu0 %v1491
        %v1645 = vpop.f32.mrf.mxu0
        %v1646 = vadd.f32 %v1513, %v1645
        %v1647 = vpop.f32.mrf.mxu0
        %v1648 = vpop.f32.mrf.mxu0
        %v1649 = vpop.f32.mrf.mxu0
        %1650 = vdwg.mxu0
        %v1651 = vmul.f32 %v1598, 0.2
        %v1652 = vmul.f32 %v1601, 0.2
        %v1653 = vmul.f32 %v1606, 0.2
        %v1654 = vmul.f32 %v1609, 0.2
        %v1655 = vmul.f32 %v1614, 0.2
        %v1656 = vmul.f32 %v1617, 0.2
        %v1657 = vmul.f32 %v1622, 0.2
        %v1658 = vmul.f32 %v1625, 0.2
        %v1659 = vmul.f32 %v1630, 0.2
        %v1660 = vmul.f32 %v1633, 0.2
        %v1661 = vmul.f32 %v1638, 0.2
        %v1662 = vmul.f32 %v1641, 0.2
        %v1663 = vmul.f32 %v1646, 0.2
        %v1664 = vmax.f32 %v1598, %v1651
        %v1665 = vmax.f32 %v1601, %v1652
        %v1666 = vmax.f32 %v1606, %v1653
        %v1667 = vmax.f32 %v1609, %v1654
        %v1668 = vmax.f32 %v1614, %v1655
        %v1669 = vmax.f32 %v1617, %v1656
        %v1670 = vmax.f32 %v1622, %v1657
        %v1671 = vmax.f32 %v1625, %v1658
        %v1672 = vmax.f32 %v1630, %v1659
        %v1673 = vmax.f32 %v1633, %v1660
        %v1674 = vmax.f32 %v1638, %v1661
        %v1675 = vmax.f32 %v1641, %v1662
        %v1676 = vmax.f32 %v1646, %v1663
        %v1677 = vpack.c.bf16 %v1665, %v1664
        %v1678 = vpack.c.bf16 %v1667, %v1666
        %v1679 = vpack.c.bf16 %v1669, %v1668
        %v1680 = vpack.c.bf16 %v1671, %v1670
        %v1681 = vpack.c.bf16 %v1673, %v1672
        %v1682 = vpack.c.bf16 %v1675, %v1674
        %v1683 = vpack.c.bf16 %v1676, %v1676
        %v1684 = vld [vmem:[#allocation13] sm:$0xff]
        %v1685 = vld [vmem:[#allocation13 + $0x8] sm:$0xff]
        %v1686 = vld [vmem:[#allocation13 + $0x10] sm:$0xff]
        %v1687 = vld [vmem:[#allocation13 + $0x18] sm:$0xff]
        %v1688 = vld [vmem:[#allocation13 + $0x20] sm:$0xff]
        %v1689 = vld [vmem:[#allocation13 + $0x28] sm:$0xff]
        %v1690 = vld [vmem:[#allocation13 + $0x30] sm:$0xff]
        %v1691 = vld [vmem:[#allocation13 + $0x38] sm:$0xff]
        %v1692 = vld [vmem:[#allocation13 + $0x40] sm:$0xff]
        %v1693 = vld [vmem:[#allocation13 + $0x48] sm:$0xff]
        %v1694 = vld [vmem:[#allocation13 + $0x50] sm:$0xff]
        %v1695 = vld [vmem:[#allocation13 + $0x58] sm:$0xff]
        %v1696 = vld [vmem:[#allocation13 + $0x60] sm:$0xff]
        %v1697 = vld [vmem:[#allocation13 + $0x68] sm:$0xff]
        %v1698 = vld [vmem:[#allocation13 + $0x70] sm:$0xff]
        %v1699 = vld [vmem:[#allocation13 + $0x78] sm:$0xff]
        %v1700 = vld [vmem:[%s12] sm:$0x3]
        %v1702 = vlaneseq
        %v1703 = vshrl.u32 %v1702, 7
        %v1704 = vsub.s32 0, %v1703
        %v1705 = vrot.slane %v1700, %v1704
        %v1706 = vlaneseq
        %v1707 = vshrl.u32 %v1706, 7
        %v1708 = vsub.s32 1, %v1707
        %v1709 = vrot.slane %v1700, %v1708
        %v1728 = vunpack.c.l.b16 %v1684
        %v1729 = vunpack.c.h.b16 %v1684
        %v1730 = vunpack.c.l.b16 %v1685
        %v1731 = vunpack.c.h.b16 %v1685
        %v1732 = vunpack.c.l.b16 %v1686
        %v1733 = vunpack.c.h.b16 %v1686
        %v1734 = vunpack.c.l.b16 %v1687
        %v1735 = vunpack.c.h.b16 %v1687
        %v1736 = vunpack.c.l.b16 %v1688
        %v1737 = vunpack.c.h.b16 %v1688
        %v1738 = vunpack.c.l.b16 %v1689
        %v1739 = vunpack.c.h.b16 %v1689
        %v1740 = vunpack.c.l.b16 %v1690
        %v1741 = vunpack.c.h.b16 %v1690
        %v1742 = vunpack.c.l.b16 %v1691
        %v1743 = vunpack.c.h.b16 %v1691
        %v1744 = vunpack.c.l.b16 %v1692
        %v1745 = vunpack.c.h.b16 %v1692
        %v1746 = vunpack.c.l.b16 %v1693
        %v1747 = vunpack.c.h.b16 %v1693
        %v1748 = vunpack.c.l.b16 %v1694
        %v1749 = vunpack.c.h.b16 %v1694
        %v1750 = vunpack.c.l.b16 %v1695
        %v1751 = vunpack.c.h.b16 %v1695
        %v1752 = vunpack.c.l.b16 %v1696
        %v1753 = vunpack.c.h.b16 %v1696
        %v1754 = vunpack.c.l.b16 %v1697
        %v1755 = vunpack.c.h.b16 %v1697
        %v1756 = vunpack.c.l.b16 %v1698
        %v1757 = vunpack.c.h.b16 %v1698
        %v1758 = vunpack.c.l.b16 %v1699
        %v1759 = vunpack.c.h.b16 %v1699
        %v1760 = vpack.c.b16 %v1730, %v1728
        %v1761 = vpack.c.b16 %v1731, %v1729
        %v1762 = vpack.c.b16 %v1734, %v1732
        %v1763 = vpack.c.b16 %v1735, %v1733
        %v1764 = vpack.c.b16 %v1738, %v1736
        %v1765 = vpack.c.b16 %v1739, %v1737
        %v1766 = vpack.c.b16 %v1742, %v1740
        %v1767 = vpack.c.b16 %v1743, %v1741
        %v1768 = vpack.c.b16 %v1746, %v1744
        %v1769 = vpack.c.b16 %v1747, %v1745
        %v1770 = vpack.c.b16 %v1750, %v1748
        %v1771 = vpack.c.b16 %v1751, %v1749
        %v1772 = vpack.c.b16 %v1754, %v1752
        %v1773 = vpack.c.b16 %v1755, %v1753
        %v1774 = vpack.c.b16 %v1758, %v1756
        %v1775 = vpack.c.b16 %v1759, %v1757
        %1792 = vmatprep.subr.bf16.mxu0 %v1775
        %1793 = vmatpush1.bf16.msra.mxu0 %v1774
        %1794 = vmatprep.subr.bf16.mxu0 %v1773
        %1795 = vmatpush1.bf16.msra.mxu0 %v1772
        %1796 = vmatprep.subr.bf16.mxu0 %v1771
        %1797 = vmatpush1.bf16.msra.mxu0 %v1770
        %1798 = vmatprep.subr.bf16.mxu0 %v1769
        %1799 = vmatpush1.bf16.msra.mxu0 %v1768
        %1800 = vmatprep.subr.bf16.mxu0 %v1767
        %1801 = vmatpush1.bf16.msra.mxu0 %v1766
        %1802 = vmatprep.subr.bf16.mxu0 %v1765
        %1803 = vmatpush1.bf16.msra.mxu0 %v1764
        %1804 = vmatprep.subr.bf16.mxu0 %v1763
        %1805 = vmatpush1.bf16.msra.mxu0 %v1762
        %1806 = vmatprep.subr.bf16.mxu0 %v1761
        %1807 = vmatpush1.bf16.msra.mxu0 %v1760
        %1808 = vmatprep.subr.bf16.mxu0 0
        %1809 = vmatpush2.bf16.msra.mxu0 0
        %1810 = vmatprep.subr.bf16.mxu0 0
        %1811 = vmatpush2.bf16.msra.mxu0 0
        %1812 = vmatprep.subr.bf16.mxu0 0
        %1813 = vmatpush2.bf16.msra.mxu0 0
        %1814 = vmatprep.subr.bf16.mxu0 0
        %1815 = vmatpush2.bf16.msra.mxu0 0
        %1816 = vmatprep.subr.bf16.mxu0 0
        %1817 = vmatpush2.bf16.msra.mxu0 0
        %1818 = vmatprep.subr.bf16.mxu0 0
        %1819 = vmatpush2.bf16.msra.mxu0 0
        %1820 = vmatprep.subr.bf16.mxu0 0
        %1821 = vmatpush2.bf16.msra.mxu0 0
        %1822 = vmatprep.subr.bf16.mxu0 0
        %1823 = vmatpush2.bf16.msra.mxu0 0
        %1824 = vmatprep.mubr.bf16.mxu0 0
        %1825 = vmatmul.mubr.bf16.gmra.mxu0 %v1677
        %v1826 = vpop.f32.mrf.mxu0
        %v1827 = vadd.f32 %v1705, %v1826
        %v1828 = vpop.f32.mrf.mxu0
        %v1829 = vadd.f32 %v1709, %v1828
        %v1830 = vpop.f32.mrf.mxu0
        %v1831 = vadd.f32 %v1705, %v1830
        %v1832 = vpop.f32.mrf.mxu0
        %v1833 = vadd.f32 %v1709, %v1832
        %1834 = vmatprep.mubr.bf16.mxu0 0
        %1835 = vmatmul.mubr.bf16.gmra.mxu0 %v1678
        %v1836 = vpop.f32.mrf.mxu0
        %v1837 = vadd.f32 %v1705, %v1836
        %v1838 = vpop.f32.mrf.mxu0
        %v1839 = vadd.f32 %v1709, %v1838
        %v1840 = vpop.f32.mrf.mxu0
        %v1841 = vadd.f32 %v1705, %v1840
        %v1842 = vpop.f32.mrf.mxu0
        %v1843 = vadd.f32 %v1709, %v1842
        %1844 = vmatprep.mubr.bf16.mxu0 0
        %1845 = vmatmul.mubr.bf16.gmra.mxu0 %v1679
        %v1846 = vpop.f32.mrf.mxu0
        %v1847 = vadd.f32 %v1705, %v1846
        %v1848 = vpop.f32.mrf.mxu0
        %v1849 = vadd.f32 %v1709, %v1848
        %v1850 = vpop.f32.mrf.mxu0
        %v1851 = vadd.f32 %v1705, %v1850
        %v1852 = vpop.f32.mrf.mxu0
        %v1853 = vadd.f32 %v1709, %v1852
        %1854 = vmatprep.mubr.bf16.mxu0 0
        %1855 = vmatmul.mubr.bf16.gmra.mxu0 %v1680
        %v1856 = vpop.f32.mrf.mxu0
        %v1857 = vadd.f32 %v1705, %v1856
        %v1858 = vpop.f32.mrf.mxu0
        %v1859 = vadd.f32 %v1709, %v1858
        %v1860 = vpop.f32.mrf.mxu0
        %v1861 = vadd.f32 %v1705, %v1860
        %v1862 = vpop.f32.mrf.mxu0
        %v1863 = vadd.f32 %v1709, %v1862
        %1864 = vmatprep.mubr.bf16.mxu0 0
        %1865 = vmatmul.mubr.bf16.gmra.mxu0 %v1681
        %v1866 = vpop.f32.mrf.mxu0
        %v1867 = vadd.f32 %v1705, %v1866
        %v1868 = vpop.f32.mrf.mxu0
        %v1869 = vadd.f32 %v1709, %v1868
        %v1870 = vpop.f32.mrf.mxu0
        %v1871 = vadd.f32 %v1705, %v1870
        %v1872 = vpop.f32.mrf.mxu0
        %v1873 = vadd.f32 %v1709, %v1872
        %1874 = vmatprep.mubr.bf16.mxu0 0
        %1875 = vmatmul.mubr.bf16.gmra.mxu0 %v1682
        %v1876 = vpop.f32.mrf.mxu0
        %v1877 = vadd.f32 %v1705, %v1876
        %v1878 = vpop.f32.mrf.mxu0
        %v1879 = vadd.f32 %v1709, %v1878
        %v1880 = vpop.f32.mrf.mxu0
        %v1881 = vadd.f32 %v1705, %v1880
        %v1882 = vpop.f32.mrf.mxu0
        %v1883 = vadd.f32 %v1709, %v1882
        %1884 = vmatprep.mubr.bf16.mxu0 0
        %1885 = vmatmul.mubr.bf16.gmra.mxu0 %v1683
        %v1886 = vpop.f32.mrf.mxu0
        %v1887 = vadd.f32 %v1705, %v1886
        %v1888 = vpop.f32.mrf.mxu0
        %v1889 = vadd.f32 %v1709, %v1888
        %v1890 = vpop.f32.mrf.mxu0
        %v1891 = vpop.f32.mrf.mxu0
        %1892 = vdwg.mxu0
        %v1893 = vmul.f32 %v1827, 0.2
        %v1894 = vmul.f32 %v1829, 0.2
        %v1895 = vmul.f32 %v1831, 0.2
        %v1896 = vmul.f32 %v1833, 0.2
        %v1897 = vmul.f32 %v1837, 0.2
        %v1898 = vmul.f32 %v1839, 0.2
        %v1899 = vmul.f32 %v1841, 0.2
        %v1900 = vmul.f32 %v1843, 0.2
        %v1901 = vmul.f32 %v1847, 0.2
        %v1902 = vmul.f32 %v1849, 0.2
        %v1903 = vmul.f32 %v1851, 0.2
        %v1904 = vmul.f32 %v1853, 0.2
        %v1905 = vmul.f32 %v1857, 0.2
        %v1906 = vmul.f32 %v1859, 0.2
        %v1907 = vmul.f32 %v1861, 0.2
        %v1908 = vmul.f32 %v1863, 0.2
        %v1909 = vmul.f32 %v1867, 0.2
        %v1910 = vmul.f32 %v1869, 0.2
        %v1911 = vmul.f32 %v1871, 0.2
        %v1912 = vmul.f32 %v1873, 0.2
        %v1913 = vmul.f32 %v1877, 0.2
        %v1914 = vmul.f32 %v1879, 0.2
        %v1915 = vmul.f32 %v1881, 0.2
        %v1916 = vmul.f32 %v1883, 0.2
        %v1917 = vmul.f32 %v1887, 0.2
        %v1918 = vmul.f32 %v1889, 0.2
        %v1919 = vmax.f32 %v1827, %v1893
        %v1920 = vmax.f32 %v1829, %v1894
        %v1921 = vmax.f32 %v1831, %v1895
        %v1922 = vmax.f32 %v1833, %v1896
        %v1923 = vmax.f32 %v1837, %v1897
        %v1924 = vmax.f32 %v1839, %v1898
        %v1925 = vmax.f32 %v1841, %v1899
        %v1926 = vmax.f32 %v1843, %v1900
        %v1927 = vmax.f32 %v1847, %v1901
        %v1928 = vmax.f32 %v1849, %v1902
        %v1929 = vmax.f32 %v1851, %v1903
        %v1930 = vmax.f32 %v1853, %v1904
        %v1931 = vmax.f32 %v1857, %v1905
        %v1932 = vmax.f32 %v1859, %v1906
        %v1933 = vmax.f32 %v1861, %v1907
        %v1934 = vmax.f32 %v1863, %v1908
        %v1935 = vmax.f32 %v1867, %v1909
        %v1936 = vmax.f32 %v1869, %v1910
        %v1937 = vmax.f32 %v1871, %v1911
        %v1938 = vmax.f32 %v1873, %v1912
        %v1939 = vmax.f32 %v1877, %v1913
        %v1940 = vmax.f32 %v1879, %v1914
        %v1941 = vmax.f32 %v1881, %v1915
        %v1942 = vmax.f32 %v1883, %v1916
        %v1943 = vmax.f32 %v1887, %v1917
        %v1944 = vmax.f32 %v1889, %v1918
        %v1945 = vpack.c.bf16 %v1921, %v1919
        %v1946 = vpack.c.bf16 %v1922, %v1920
        %v1947 = vpack.c.bf16 %v1925, %v1923
        %v1948 = vpack.c.bf16 %v1926, %v1924
        %v1949 = vpack.c.bf16 %v1929, %v1927
        %v1950 = vpack.c.bf16 %v1930, %v1928
        %v1951 = vpack.c.bf16 %v1933, %v1931
        %v1952 = vpack.c.bf16 %v1934, %v1932
        %v1953 = vpack.c.bf16 %v1937, %v1935
        %v1954 = vpack.c.bf16 %v1938, %v1936
        %v1955 = vpack.c.bf16 %v1941, %v1939
        %v1956 = vpack.c.bf16 %v1942, %v1940
        %v1957 = vpack.c.bf16 %v1943, %v1943
        %v1958 = vpack.c.bf16 %v1944, %v1944
        %v1973 = vunpack.c.l.b16 %v1945
        %v1974 = vunpack.c.l.b16 %v1946
        %v1975 = vunpack.c.h.b16 %v1945
        %v1976 = vunpack.c.h.b16 %v1946
        %v1977 = vunpack.c.l.b16 %v1947
        %v1978 = vunpack.c.l.b16 %v1948
        %v1979 = vunpack.c.h.b16 %v1947
        %v1980 = vunpack.c.h.b16 %v1948
        %v1981 = vunpack.c.l.b16 %v1949
        %v1982 = vunpack.c.l.b16 %v1950
        %v1983 = vunpack.c.h.b16 %v1949
        %v1984 = vunpack.c.h.b16 %v1950
        %v1985 = vunpack.c.l.b16 %v1951
        %v1986 = vunpack.c.l.b16 %v1952
        %v1987 = vunpack.c.h.b16 %v1951
        %v1988 = vunpack.c.h.b16 %v1952
        %v1989 = vunpack.c.l.b16 %v1953
        %v1990 = vunpack.c.l.b16 %v1954
        %v1991 = vunpack.c.h.b16 %v1953
        %v1992 = vunpack.c.h.b16 %v1954
        %v1993 = vunpack.c.l.b16 %v1955
        %v1994 = vunpack.c.l.b16 %v1956
        %v1995 = vunpack.c.h.b16 %v1955
        %v1996 = vunpack.c.h.b16 %v1956
        %v1997 = vunpack.c.l.b16 %v1957
        %v1998 = vunpack.c.l.b16 %v1958
        %v1999 = vpack.c.b16 %v1974, %v1973
        %v2000 = vpack.c.b16 %v1976, %v1975
        %v2001 = vpack.c.b16 %v1978, %v1977
        %v2002 = vpack.c.b16 %v1980, %v1979
        %v2003 = vpack.c.b16 %v1982, %v1981
        %v2004 = vpack.c.b16 %v1984, %v1983
        %v2005 = vpack.c.b16 %v1986, %v1985
        %v2006 = vpack.c.b16 %v1988, %v1987
        %v2007 = vpack.c.b16 %v1990, %v1989
        %v2008 = vpack.c.b16 %v1992, %v1991
        %v2009 = vpack.c.b16 %v1994, %v1993
        %v2010 = vpack.c.b16 %v1996, %v1995
        %v2011 = vpack.c.b16 %v1998, %v1997
        %2025 = vst [vmem:[%s581] sm:$0xff] %v1999
        %2026 = vst [vmem:[%s581 + $0x8] sm:$0xff] %v2000
        %2027 = vst [vmem:[%s581 + $0x10] sm:$0xff] %v2001
        %2028 = vst [vmem:[%s581 + $0x18] sm:$0xff] %v2002
        %2029 = vst [vmem:[%s581 + $0x20] sm:$0xff] %v2003
        %2030 = vst [vmem:[%s581 + $0x28] sm:$0xff] %v2004
        %2031 = vst [vmem:[%s581 + $0x30] sm:$0xff] %v2005
        %2032 = vst [vmem:[%s581 + $0x38] sm:$0xff] %v2006
        %2033 = vst [vmem:[%s581 + $0x40] sm:$0xff] %v2007
        %2034 = vst [vmem:[%s581 + $0x48] sm:$0xff] %v2008
        %2035 = vst [vmem:[%s581 + $0x50] sm:$0xff] %v2009
        %2036 = vst [vmem:[%s581 + $0x58] sm:$0xff] %v2010
        %2037 = vst [vmem:[%s581 + $0x60] sm:$0xff] %v2011
        %s2038 = sand.u32 %s321, 1
        %s2039 = scalar_lea.sflag [#allocation4], %s2038
        %s2040 = sand.u32 %s321, 1
        %s2041 = smul.addr %s2040, 104
        %s2042 = scalar_lea.vmem [#allocation14], %s2041
        %s2043 = sand.u32 %s347, 1
        %s2044 = sand.u32 %s347, 1
        %s2045 = smul.addr %s2044, 104
        %s2046 = scalar_lea.vmem [#allocation15], %s2045
        // Predicated region
        $region101: #{fcae_forward.1} parent=71 // pred_check
          %p2047 = pneg %p331
        $region102: #{fcae_forward.1} parent=71 // pred_check_branch
          %2049 = sbr.rel (%p2047) target = $region104
        $region103: #{fcae_forward.1} parent=71 // pred_region
          %s2050 = smul.u32 13, %s35
          %s2051 = ssub.s32 25, %s2050
          %p2052 = scmp.lt.s32.totalorder %s2051, 13
          %s2053 = scalar_select %p2052, %s2051, 13
          %s2054 = smul.u32 64, %s2053
          %s2055 = smul.u32 %s2054, 2
          %s2057 = ssub.s32 1664, %s2055
          %2058 = vsyncadd %s2039, %s2057
          %p2059 = scmp.ne.s32.totalorder 0, %s2055
          %s2060 = smul.addr %s2050, 2
          %s2061 = smul.addr %s2060, 64
          %s2062 = scalar_lea.hbm %s13, %s2061
          %s2063 = smul.u32 8, %s2053
          %s2064 = sshll.u32 %s2042, 4
          %s2065 = int_to_ptr.vmem [resolvable:$true] %s2064
          %s2066 = sshll.u32 %s2063, 4
          %2070 = dma.vmem_to_hbm [thread:$0]  (%p2059), %s2065, %s2066, %s2062, %s2039, 128, 128, 8
        $region104: #{fcae_forward.1} parent=71 // pred_fallthru
          _
        // Predicated region
        $region105: #{fcae_forward.1} parent=71 // pred_check
          %p2071 = pneg %p357
        $region106: #{fcae_forward.1} parent=71 // pred_check_branch
          %2073 = sbr.rel (%p2071) target = $region108
        $region107: #{fcae_forward.1} parent=71 // pred_region
          %s2074 = smul.u32 13, %s35
          %s2075 = ssub.s32 25, %s2074
          %p2076 = scmp.lt.s32.totalorder %s2075, 13
          %s2077 = scalar_select %p2076, %s2075, 13
          %s2078 = smul.u32 128, %s2077
          %p2079 = scmp.ne.s32.totalorder 0, %s2078
          %s2080 = smul.addr %s2074, 8
          %s2081 = scalar_lea.vmem %s14, %s2080
          // Predicated region
          $region109: #{fcae_forward.1} parent=107 // pred_check
            %p2082 = pneg %p2079
          $region110: #{fcae_forward.1} parent=107 // pred_check_branch
            %2084 = sbr.rel (%p2082) target = $region112
          $region111: #{fcae_forward.1} parent=107 // pred_region
            // Predicated region
            $region113: #{fcae_forward.1} parent=111 // pred_check
              _
            $region114: #{fcae_forward.1} parent=111 // pred_check_branch
              %2086 = sbr.rel (0) target = $region116
            $region115: #{fcae_forward.1} parent=111 // pred_region
              // Predicated region
              $region135: #{fcae_forward.1} parent=115 // pred_check
                _
              $region136: #{fcae_forward.1} parent=115 // pred_check_branch
                %2161 = sbr.rel (0) target = $region138
              $region137: #{fcae_forward.1} parent=115 // pred_region
                %s2162 = sdiv.u32.pop %s2077, 13
                %s2163 = srem.u32.pop %s2077, 13
                // While loop
                $region139: #{fcae_forward.1} parent=137 // loop_pre_header
                  _
                $region140: #{fcae_forward.1} parent=137 // loop_header
                  %s2165 = sphi 0, %s2167
                  %p2166 = scmp.ge.s32.totalorder %s2165, %s2162
                  %s2170 = sphi 0, %s2201
                  %s2171 = sphi %s2046, %s2204
                  %s2172 = sphi %s2081, %s2205
                $region141: #{fcae_forward.1} parent=137 // loop_header_branch
                  %2169 = sbr.rel (%p2166) target = $region145
                $region142: #{fcae_forward.1} parent=137 // loop_body
                  %v2173 = vld [vmem:[%s2171] sm:$0xff]
                  %2174 = vst [vmem:[%s2172] sm:$0xff] %v2173
                  %v2175 = vld [vmem:[%s2171 + $0x8] sm:$0xff]
                  %2176 = vst [vmem:[%s2172 + $0x8] sm:$0xff] %v2175
                  %v2177 = vld [vmem:[%s2171 + $0x10] sm:$0xff]
                  %2178 = vst [vmem:[%s2172 + $0x10] sm:$0xff] %v2177
                  %v2179 = vld [vmem:[%s2171 + $0x18] sm:$0xff]
                  %2180 = vst [vmem:[%s2172 + $0x18] sm:$0xff] %v2179
                  %v2181 = vld [vmem:[%s2171 + $0x20] sm:$0xff]
                  %2182 = vst [vmem:[%s2172 + $0x20] sm:$0xff] %v2181
                  %v2183 = vld [vmem:[%s2171 + $0x28] sm:$0xff]
                  %2184 = vst [vmem:[%s2172 + $0x28] sm:$0xff] %v2183
                  %v2185 = vld [vmem:[%s2171 + $0x30] sm:$0xff]
                  %2186 = vst [vmem:[%s2172 + $0x30] sm:$0xff] %v2185
                  %v2187 = vld [vmem:[%s2171 + $0x38] sm:$0xff]
                  %2188 = vst [vmem:[%s2172 + $0x38] sm:$0xff] %v2187
                  %v2189 = vld [vmem:[%s2171 + $0x40] sm:$0xff]
                  %2190 = vst [vmem:[%s2172 + $0x40] sm:$0xff] %v2189
                  %v2191 = vld [vmem:[%s2171 + $0x48] sm:$0xff]
                  %2192 = vst [vmem:[%s2172 + $0x48] sm:$0xff] %v2191
                  %v2193 = vld [vmem:[%s2171 + $0x50] sm:$0xff]
                  %2194 = vst [vmem:[%s2172 + $0x50] sm:$0xff] %v2193
                  %v2195 = vld [vmem:[%s2171 + $0x58] sm:$0xff]
                  %2196 = vst [vmem:[%s2172 + $0x58] sm:$0xff] %v2195
                  %v2197 = vld [vmem:[%s2171 + $0x60] sm:$0xff]
                  %2198 = vst [vmem:[%s2172 + $0x60] sm:$0xff] %v2197
                  %s2199 = sadd.s32 1, %s2170
                  %p2200 = scmp.ge.s32.totalorder %s2199, %s2162
                  %s2201 = scalar_select %p2200, 0, %s2199
                  %s2202 = smul.u32 %s2201, 104
                  %s2203 = smul.u32 %s2201, 104
                  %s2204 = scalar_lea.vmem %s2046, %s2202 [#allocation15]
                  %s2205 = scalar_lea.vmem %s2081, %s2203
                $region143: #{fcae_forward.1} parent=137 // loop_footer
                  %s2167 = sadd.s32 %s2165, 1
                $region144: #{fcae_forward.1} parent=137 // loop_footer_branch
                  %2164 = sbr.rel target = $region140
                $region145: #{fcae_forward.1} parent=137 // loop_exit
                  _
                %s2206 = sdiv.u32.pop %s2077, 13
                %s2207 = srem.u32.pop %s2077, 13
                %s2208 = smul.u32 %s2206, 13
                %s2209 = smul.u32 8, %s2208
                %s2210 = scalar_lea.vmem %s2046, %s2209 [#allocation15]
                %s2211 = smul.u32 8, %s2208
                %s2212 = scalar_lea.vmem %s2081, %s2211
                // While loop
                $region146: #{fcae_forward.1} parent=137 // loop_pre_header
                  _
                $region147: #{fcae_forward.1} parent=137 // loop_header
                  %s2214 = sphi 0, %s2216
                  %p2215 = scmp.ge.s32.totalorder %s2214, %s2207
                  %s2219 = sphi 0, %s2226
                  %s2220 = sphi %s2210, %s2229
                  %s2221 = sphi %s2212, %s2230
                $region148: #{fcae_forward.1} parent=137 // loop_header_branch
                  %2218 = sbr.rel (%p2215) target = $region152
                $region149: #{fcae_forward.1} parent=137 // loop_body
                  %v2222 = vld [vmem:[%s2220] sm:$0xff]
                  %2223 = vst [vmem:[%s2221] sm:$0xff] %v2222
                  %s2224 = sadd.s32 1, %s2219
                  %p2225 = scmp.ge.s32.totalorder %s2224, %s2207
                  %s2226 = scalar_select %p2225, 0, %s2224
                  %s2227 = smul.u32 %s2226, 8
                  %s2228 = smul.u32 %s2226, 8
                  %s2229 = scalar_lea.vmem %s2210, %s2227 [#allocation15]
                  %s2230 = scalar_lea.vmem %s2212, %s2228
                $region150: #{fcae_forward.1} parent=137 // loop_footer
                  %s2216 = sadd.s32 %s2214, 1
                $region151: #{fcae_forward.1} parent=137 // loop_footer_branch
                  %2213 = sbr.rel target = $region147
                $region152: #{fcae_forward.1} parent=137 // loop_exit
                  _
              $region138: #{fcae_forward.1} parent=115 // pred_fallthru
                _
              // Predicated region
              $region153: #{fcae_forward.1} parent=115 // pred_check
                _
              $region154: #{fcae_forward.1} parent=115 // pred_check_branch
                %2232 = sbr.rel target = $region156
              $region155: #{fcae_forward.1} parent=115 // pred_region
                _
              $region156: #{fcae_forward.1} parent=115 // pred_fallthru
                _
            $region116: #{fcae_forward.1} parent=111 // pred_fallthru
              _
            // Predicated region
            $region117: #{fcae_forward.1} parent=111 // pred_check
              _
            $region118: #{fcae_forward.1} parent=111 // pred_check_branch
              %2088 = sbr.rel target = $region120
            $region119: #{fcae_forward.1} parent=111 // pred_region
              %s2090 = ssub.s32 256, 1
              %s2091 = sdiv.u32.pop %s2077, 13
              %s2092 = srem.u32.pop %s2077, 13
              // While loop
              $region121: #{fcae_forward.1} parent=119 // loop_pre_header
                _
              $region122: #{fcae_forward.1} parent=119 // loop_header
                %s2094 = sphi 0, %s2096
                %p2095 = scmp.ge.s32.totalorder %s2094, %s2091
                %s2099 = sphi 0, %s2130
                %s2100 = sphi %s2046, %s2133
                %s2101 = sphi %s2081, %s2134
              $region123: #{fcae_forward.1} parent=119 // loop_header_branch
                %2098 = sbr.rel (%p2095) target = $region127
              $region124: #{fcae_forward.1} parent=119 // loop_body
                %v2102 = vld [vmem:[%s2100] sm:%s2090]
                %2103 = vst [vmem:[%s2101] sm:%s2090] %v2102
                %v2104 = vld [vmem:[%s2100 + $0x8] sm:%s2090]
                %2105 = vst [vmem:[%s2101 + $0x8] sm:%s2090] %v2104
                %v2106 = vld [vmem:[%s2100 + $0x10] sm:%s2090]
                %2107 = vst [vmem:[%s2101 + $0x10] sm:%s2090] %v2106
                %v2108 = vld [vmem:[%s2100 + $0x18] sm:%s2090]
                %2109 = vst [vmem:[%s2101 + $0x18] sm:%s2090] %v2108
                %v2110 = vld [vmem:[%s2100 + $0x20] sm:%s2090]
                %2111 = vst [vmem:[%s2101 + $0x20] sm:%s2090] %v2110
                %v2112 = vld [vmem:[%s2100 + $0x28] sm:%s2090]
                %2113 = vst [vmem:[%s2101 + $0x28] sm:%s2090] %v2112
                %v2114 = vld [vmem:[%s2100 + $0x30] sm:%s2090]
                %2115 = vst [vmem:[%s2101 + $0x30] sm:%s2090] %v2114
                %v2116 = vld [vmem:[%s2100 + $0x38] sm:%s2090]
                %2117 = vst [vmem:[%s2101 + $0x38] sm:%s2090] %v2116
                %v2118 = vld [vmem:[%s2100 + $0x40] sm:%s2090]
                %2119 = vst [vmem:[%s2101 + $0x40] sm:%s2090] %v2118
                %v2120 = vld [vmem:[%s2100 + $0x48] sm:%s2090]
                %2121 = vst [vmem:[%s2101 + $0x48] sm:%s2090] %v2120
                %v2122 = vld [vmem:[%s2100 + $0x50] sm:%s2090]
                %2123 = vst [vmem:[%s2101 + $0x50] sm:%s2090] %v2122
                %v2124 = vld [vmem:[%s2100 + $0x58] sm:%s2090]
                %2125 = vst [vmem:[%s2101 + $0x58] sm:%s2090] %v2124
                %v2126 = vld [vmem:[%s2100 + $0x60] sm:%s2090]
                %2127 = vst [vmem:[%s2101 + $0x60] sm:%s2090] %v2126
                %s2128 = sadd.s32 1, %s2099
                %p2129 = scmp.ge.s32.totalorder %s2128, %s2091
                %s2130 = scalar_select %p2129, 0, %s2128
                %s2131 = smul.u32 %s2130, 104
                %s2132 = smul.u32 %s2130, 104
                %s2133 = scalar_lea.vmem %s2046, %s2131 [#allocation15]
                %s2134 = scalar_lea.vmem %s2081, %s2132
              $region125: #{fcae_forward.1} parent=119 // loop_footer
                %s2096 = sadd.s32 %s2094, 1
              $region126: #{fcae_forward.1} parent=119 // loop_footer_branch
                %2093 = sbr.rel target = $region122
              $region127: #{fcae_forward.1} parent=119 // loop_exit
                _
              %s2135 = sdiv.u32.pop %s2077, 13
              %s2136 = srem.u32.pop %s2077, 13
              %s2137 = smul.u32 %s2135, 13
              %s2138 = smul.u32 8, %s2137
              %s2139 = scalar_lea.vmem %s2046, %s2138 [#allocation15]
              %s2140 = smul.u32 8, %s2137
              %s2141 = scalar_lea.vmem %s2081, %s2140
              // While loop
              $region128: #{fcae_forward.1} parent=119 // loop_pre_header
                _
              $region129: #{fcae_forward.1} parent=119 // loop_header
                %s2143 = sphi 0, %s2145
                %p2144 = scmp.ge.s32.totalorder %s2143, %s2136
                %s2148 = sphi 0, %s2155
                %s2149 = sphi %s2139, %s2158
                %s2150 = sphi %s2141, %s2159
              $region130: #{fcae_forward.1} parent=119 // loop_header_branch
                %2147 = sbr.rel (%p2144) target = $region134
              $region131: #{fcae_forward.1} parent=119 // loop_body
                %v2151 = vld [vmem:[%s2149] sm:%s2090]
                %2152 = vst [vmem:[%s2150] sm:%s2090] %v2151
                %s2153 = sadd.s32 1, %s2148
                %p2154 = scmp.ge.s32.totalorder %s2153, %s2136
                %s2155 = scalar_select %p2154, 0, %s2153
                %s2156 = smul.u32 %s2155, 8
                %s2157 = smul.u32 %s2155, 8
                %s2158 = scalar_lea.vmem %s2139, %s2156 [#allocation15]
                %s2159 = scalar_lea.vmem %s2141, %s2157
              $region132: #{fcae_forward.1} parent=119 // loop_footer
                %s2145 = sadd.s32 %s2143, 1
              $region133: #{fcae_forward.1} parent=119 // loop_footer_branch
                %2142 = sbr.rel target = $region129
              $region134: #{fcae_forward.1} parent=119 // loop_exit
                _
            $region120: #{fcae_forward.1} parent=111 // pred_fallthru
              _
          $region112: #{fcae_forward.1} parent=107 // pred_fallthru
            _
          %2233 = vnop
        $region108: #{fcae_forward.1} parent=71 // pred_fallthru
          _
      $region72: #{fcae_forward.1} parent=5 // pred_fallthru
        _
      %p2234 = scmp.le.s32.totalorder 2, %s30
      // Predicated region
      $region157: #{fcae_forward.1} parent=5 // pred_check
        %p2235 = pneg %p2234
      $region158: #{fcae_forward.1} parent=5 // pred_check_branch
        %2237 = sbr.rel (%p2235) target = $region160
      $region159: #{fcae_forward.1} parent=5 // pred_region
        %s2238 = ssub.s32 %s30, 2
        // Predicated region
        $region161: #{fcae_forward.1} parent=159 // pred_check
          %p2239 = pneg %p337
        $region162: #{fcae_forward.1} parent=159 // pred_check_branch
          %2241 = sbr.rel (%p2239) target = $region164
        $region163: #{fcae_forward.1} parent=159 // pred_region
          %s2242 = sand.u32 %s322, 1
          %s2243 = scalar_lea.sflag [#allocation4], %s2242
          %s2244 = sand.u32 %s322, 1
          %s2245 = smul.addr %s2244, 104
          %s2246 = scalar_lea.vmem [#allocation14], %s2245
          %2247 = dma.done %s2243, 1664
        $region164: #{fcae_forward.1} parent=159 // pred_fallthru
          _
        // Predicated region
        $region165: #{fcae_forward.1} parent=159 // pred_check
          %p2248 = pneg %p363
        $region166: #{fcae_forward.1} parent=159 // pred_check_branch
          %2250 = sbr.rel (%p2248) target = $region168
        $region167: #{fcae_forward.1} parent=159 // pred_region
          %s2251 = sand.u32 %s348, 1
          %s2252 = sand.u32 %s348, 1
          %s2253 = smul.addr %s2252, 104
          %s2254 = scalar_lea.vmem [#allocation15], %s2253
        $region168: #{fcae_forward.1} parent=159 // pred_fallthru
          _
      $region160: #{fcae_forward.1} parent=5 // pred_fallthru
        _
    $region6: #{fcae_forward.1} parent=1 // loop_footer
      %s34 = sadd.s32 1, %s30
    $region7: #{fcae_forward.1} parent=1 // loop_footer_branch
      %29 = sbr.rel target = $region3
    $region8: #{fcae_forward.1} parent=1 // loop_exit
      _
    %2255 = vsyncpa [#allocation3], 1
    %s2256 = scalar_lea.sflag [#allocation3], 1
    %2257 = vsyncpa %s2256, 1
    %2258 = vsyncpa [#allocation6], 1
    %2259 = vsyncpa [#allocation9], 1
    %2260 = vsyncpa [#allocation12], 1
    %2261 = vsyncpa [#allocation4], 1
    %s2262 = scalar_lea.sflag [#allocation4], 1
    %2263 = vsyncpa %s2262, 1

</llo_original>
